<compile_context>
chip_gen: v6e
topology: v6e:2x2x1
jax: 0.10.0
libtpu: 0.0.40
codegen_flags: <defaults>
</compile_context>

<pallas_src>
import math
import functools

import jax
import jax.numpy as jnp
import numpy as np
from jax import lax
from jax.experimental import pallas as pl
from jax.experimental.pallas import tpu as pltpu


# ----------------------------------------------------------------------------
# Fused Pallas kernel
# ----------------------------------------------------------------------------
def _gnn_layer_body(seq, adj, w_cat, n_head, d_out):
    """One GNNLayer (active=True), heads unrolled, adj-matmul hoisted.

    seq:   (N, Din)  float32
    adj:   (N, N)    float32
    w_cat: (Din, 2*H*Dout) packed pre-transposed weights:
           columns [h*Dout:(h+1)*Dout]         = w1_h.T
           columns [(H+h)*Dout:(H+h+1)*Dout]   = w2_h.T
    """
    inv_sqrt_d = 1.0 / math.sqrt(float(d_out))

    # One wide MXU push for every projection of every head, one tanh stream.
    fts_all = jnp.tanh(jnp.dot(seq, w_cat, preferred_element_type=jnp.float32))

    acc = jnp.zeros((seq.shape[0], d_out), jnp.float32)
    for h in range(n_head):
        fts = fts_all[:, h * d_out:(h + 1) * d_out]                    # tanh(seq@w1.T)
        fts2 = fts_all[:, (n_head + h) * d_out:(n_head + h + 1) * d_out]

        # logits = fts2 @ fts.T / sqrt(Dout)   (contract last dims, no .T)
        logits = lax.dot_general(
            fts2, fts, (((1,), (1,)), ((), ())),
            preferred_element_type=jnp.float32) * inv_sqrt_d

        # coefs = exp(logits) * adj ; coefs /= sum(coefs, dim=-1)
        # NOTE: torch broadcasting of (N,N) /= (N,) divides column j by
        # row-sum j (faithful to the reference, not a standard softmax).
        coefs = jnp.exp(logits) * adj
        denom = jnp.sum(coefs, axis=-1)[None, :]                       # (1, N)
        coefs = coefs * pl.reciprocal(denom, approx=False)

        # active=True path: tanh applied a second time before aggregation.
        acc = acc + jnp.dot(coefs, jnp.tanh(fts),
                            preferred_element_type=jnp.float32)

    # Hoisted: adj @ mean_h(...) == mean_h(adj @ ...)
    return jnp.dot(adj, acc, preferred_element_type=jnp.float32) * (1.0 / n_head)


def _decoder_kernel(seq_ref, adj_ref, w4_ref, w5_ref, w6_ref,
                    zhat_ref, zadj_ref, *, heads, d_outs):
    adj = adj_ref[...]

    z = _gnn_layer_body(seq_ref[...], adj, w4_ref[...], heads[0], d_outs[0])
    z = _gnn_layer_body(z, adj, w5_ref[...], heads[1], d_outs[1])
    z_hat = _gnn_layer_body(z, adj, w6_ref[...], heads[2], d_outs[2])

    zhat_ref[...] = z_hat

    # z_hat_adj = sigmoid(z_hat @ z_hat.T)  (contract last dims, no .T)
    gram = lax.dot_general(z_hat, z_hat, (((1,), (1,)), ((), ())),
                           preferred_element_type=jnp.float32)
    zadj_ref[...] = jax.nn.sigmoid(gram)


# ----------------------------------------------------------------------------
# Wrapper
# ----------------------------------------------------------------------------
def _pack_weights(w1_stack, w2_stack):
    """(H, Dout, Din) x2 torch-style -> (Din, 2*H*Dout) pre-transposed pack."""
    h, d_out, d_in = w1_stack.shape
    w1_t = jnp.transpose(w1_stack, (2, 0, 1)).reshape(d_in, h * d_out)
    w2_t = jnp.transpose(w2_stack, (2, 0, 1)).reshape(d_in, h * d_out)
    return jnp.concatenate([w1_t, w2_t], axis=1)


@jax.jit
def igae_decoder_forward(z_igae, adj, params):
    n = z_igae.shape[0]

    heads = (params["gnn4_w1"].shape[0],
             params["gnn5_w1"].shape[0],
             params["gnn6_w1"].shape[0])
    d_outs = (params["gnn4_w1"].shape[1],
              params["gnn5_w1"].shape[1],
              params["gnn6_w1"].shape[1])

    w4 = _pack_weights(params["gnn4_w1"], params["gnn4_w2"])
    w5 = _pack_weights(params["gnn5_w1"], params["gnn5_w2"])
    w6 = _pack_weights(params["gnn6_w1"], params["gnn6_w2"])

    kernel = functools.partial(_decoder_kernel, heads=heads, d_outs=d_outs)

    full = lambda shape: pl.BlockSpec(shape, lambda: (0, 0))

    z_hat, z_hat_adj = pl.pallas_call(
        kernel,
        out_shape=(jax.ShapeDtypeStruct((n, d_outs[2]), jnp.float32),
                   jax.ShapeDtypeStruct((n, n), jnp.float32)),
        in_specs=[
            full(z_igae.shape),
            full(adj.shape),
            full(w4.shape),
            full(w5.shape),
            full(w6.shape),
        ],
        out_specs=(
            full((n, d_outs[2])),
            full((n, n)),
        ),
        compiler_params=pltpu.CompilerParams(
            vmem_limit_bytes=32 * 1024 * 1024),
    )(z_igae, adj, w4, w5, w6)

    return z_hat, z_hat_adj


# ----------------------------------------------------------------------------
# Pure-JAX reference (for correctness check)
# ----------------------------------------------------------------------------
def _ref_head(seq, adj, w1, w2):
    fts = jnp.tanh(seq @ w1.T)
    fts2 = jnp.tanh(seq @ w2.T)
    logits = (fts2 @ fts.T) / np.sqrt(fts.shape[-1])
    coefs = jnp.exp(logits) * adj
    coefs = coefs / jnp.sum(coefs, axis=-1)[None, :]
    fts = jnp.tanh(fts)
    ret = coefs @ fts
    return adj @ ret


def _ref_layer(seq, adj, w1s, w2s):
    out = jnp.zeros((seq.shape[0], w1s.shape[1]), jnp.float32)
    for h in range(w1s.shape[0]):
        out = out + _ref_head(seq, adj, w1s[h], w2s[h]) / w1s.shape[0]
    return out


def _ref_forward(z_igae, adj, p):
    z = _ref_layer(z_igae, adj, p["gnn4_w1"], p["gnn4_w2"])
    z = _ref_layer(z, adj, p["gnn5_w1"], p["gnn5_w2"])
    z_hat = _ref_layer(z, adj, p["gnn6_w1"], p["gnn6_w2"])
    return z_hat, jax.nn.sigmoid(z_hat @ z_hat.T)


# ----------------------------------------------------------------------------
# Deterministic parameter init (xavier uniform, like torch)
# ----------------------------------------------------------------------------
def xavier_uniform(key, n_head, out_f, in_f):
    bound = math.sqrt(6.0 / (in_f + out_f))
    return jax.random.uniform(key, (n_head, out_f, in_f), jnp.float32,
                              minval=-bound, maxval=bound)


if __name__ == "__main__":
    # small decoder config: gae_n_dec_1=16, gae_n_dec_2=32, gae_n_dec_3=32,
    # n_input=64, n_head=(2, 2, 2), N=16 graph nodes
    N = 16
    gae_n_dec_1, gae_n_dec_2, gae_n_dec_3, n_input = 16, 32, 32, 64
    n_head = (2, 2, 2)

    key = jax.random.PRNGKey(0)
    ks = jax.random.split(key, 8)

    params = {
        "gnn4_w1": xavier_uniform(ks[0], n_head[0], gae_n_dec_2, gae_n_dec_1),
        "gnn4_w2": xavier_uniform(ks[1], n_head[0], gae_n_dec_2, gae_n_dec_1),
        "gnn5_w1": xavier_uniform(ks[2], n_head[1], gae_n_dec_3, gae_n_dec_2),
        "gnn5_w2": xavier_uniform(ks[3], n_head[1], gae_n_dec_3, gae_n_dec_2),
        "gnn6_w1": xavier_uniform(ks[4], n_head[2], n_input, gae_n_dec_3),
        "gnn6_w2": xavier_uniform(ks[5], n_head[2], n_input, gae_n_dec_3),
    }

    z_igae = jax.random.normal(ks[6], (N, gae_n_dec_1), jnp.float32)
    # strictly positive adjacency so the per-column normalization is well-defined
    adj = jax.random.uniform(ks[7], (N, N), jnp.float32, minval=0.1, maxval=1.0)

    z_hat, z_hat_adj = igae_decoder_forward(z_igae, adj, params)
    jax.block_until_ready((z_hat, z_hat_adj))

    z_hat_ref, z_hat_adj_ref = _ref_forward(z_igae, adj, params)
    np.testing.assert_allclose(np.asarray(z_hat), np.asarray(z_hat_ref),
                               rtol=1e-4, atol=1e-4)
    np.testing.assert_allclose(np.asarray(z_hat_adj), np.asarray(z_hat_adj_ref),
                               rtol=1e-4, atol=1e-4)

    assert z_hat.shape == (N, n_input)
    assert z_hat_adj.shape == (N, N)
    print("KERNEL_OK")
</pallas_src>

<mosaic_0001>
module attributes {stable_mosaic.version = 11 : i64} {
  func.func @_decoder_kernel(%arg0: memref<16x16xf32, #tpu.memory_space<vmem>>, %arg1: memref<16x16xf32, #tpu.memory_space<vmem>>, %arg2: memref<16x128xf32, #tpu.memory_space<vmem>>, %arg3: memref<32x128xf32, #tpu.memory_space<vmem>>, %arg4: memref<32x256xf32, #tpu.memory_space<vmem>>, %arg5: memref<16x64xf32, #tpu.memory_space<vmem>>, %arg6: memref<16x16xf32, #tpu.memory_space<vmem>>) attributes {dimension_semantics = [], scalar_prefetch = 0 : i64, scratch_operands = 0 : i64, tpu.core_type = #tpu.core_type<tc>} {
    %c0 = arith.constant 0 : index
    %c0_0 = arith.constant 0 : index
    %0 = vector.load %arg1[%c0, %c0_0] : memref<16x16xf32, #tpu.memory_space<vmem>>, vector<16x16xf32>
    %c0_1 = arith.constant 0 : index
    %c0_2 = arith.constant 0 : index
    %1 = vector.load %arg0[%c0_1, %c0_2] : memref<16x16xf32, #tpu.memory_space<vmem>>, vector<16x16xf32>
    %c0_3 = arith.constant 0 : index
    %c0_4 = arith.constant 0 : index
    %2 = vector.load %arg2[%c0_3, %c0_4] : memref<16x128xf32, #tpu.memory_space<vmem>>, vector<16x128xf32>
    %cst = arith.constant dense<0.000000e+00> : vector<16x128xf32>
    %3 = tpu.matmul %1, %2, %cst {dimension_numbers = #tpu.dot_dimension_numbers<[1], [0], [0], [1], [0, 0, 1, 1], [], []>} : vector<16x16xf32>, vector<16x128xf32>, vector<16x128xf32> -> vector<16x128xf32>
    %4 = math.tanh %3 : vector<16x128xf32>
    %cst_5 = arith.constant 0.000000e+00 : f32
    %5 = vector.broadcast %cst_5 : f32 to vector<16x32xf32>
    %6 = vector.extract_strided_slice %4 {offsets = [0, 0], sizes = [16, 32], strides = [1, 1]} : vector<16x128xf32> to vector<16x32xf32>
    %7 = vector.extract_strided_slice %4 {offsets = [0, 64], sizes = [16, 32], strides = [1, 1]} : vector<16x128xf32> to vector<16x32xf32>
    %cst_6 = arith.constant dense<0.000000e+00> : vector<16x16xf32>
    %8 = tpu.matmul %7, %6, %cst_6 {dimension_numbers = #tpu.dot_dimension_numbers<[1], [1], [0], [0], [0, 0, 1, 0], [], []>} : vector<16x32xf32>, vector<16x32xf32>, vector<16x16xf32> -> vector<16x16xf32>
    %cst_7 = arith.constant 0.176776692 : f32
    %9 = vector.broadcast %cst_7 : f32 to vector<16x16xf32>
    %10 = arith.mulf %8, %9 : vector<16x16xf32>
    %11 = math.exp %10 : vector<16x16xf32>
    %12 = arith.mulf %11, %0 : vector<16x16xf32>
    %cst_8 = arith.constant dense<0.000000e+00> : vector<16xf32>
    %13 = vector.multi_reduction <add>, %12, %cst_8 [1] : vector<16x16xf32> to vector<16xf32>
    %14 = vector.shape_cast %13 : vector<16xf32> to vector<1x16xf32>
    %15 = tpu.reciprocal %14 : vector<1x16xf32> -> vector<1x16xf32>
    %16 = vector.broadcast %15 : vector<1x16xf32> to vector<16x16xf32>
    %17 = arith.mulf %12, %16 : vector<16x16xf32>
    %18 = math.tanh %6 : vector<16x32xf32>
    %cst_9 = arith.constant dense<0.000000e+00> : vector<16x32xf32>
    %19 = tpu.matmul %17, %18, %cst_9 {dimension_numbers = #tpu.dot_dimension_numbers<[1], [0], [0], [1], [0, 0, 1, 1], [], []>} : vector<16x16xf32>, vector<16x32xf32>, vector<16x32xf32> -> vector<16x32xf32>
    %20 = arith.addf %5, %19 : vector<16x32xf32>
    %21 = vector.extract_strided_slice %4 {offsets = [0, 32], sizes = [16, 32], strides = [1, 1]} : vector<16x128xf32> to vector<16x32xf32>
    %22 = vector.extract_strided_slice %4 {offsets = [0, 96], sizes = [16, 32], strides = [1, 1]} : vector<16x128xf32> to vector<16x32xf32>
    %cst_10 = arith.constant dense<0.000000e+00> : vector<16x16xf32>
    %23 = tpu.matmul %22, %21, %cst_10 {dimension_numbers = #tpu.dot_dimension_numbers<[1], [1], [0], [0], [0, 0, 1, 0], [], []>} : vector<16x32xf32>, vector<16x32xf32>, vector<16x16xf32> -> vector<16x16xf32>
    %cst_11 = arith.constant 0.176776692 : f32
    %24 = vector.broadcast %cst_11 : f32 to vector<16x16xf32>
    %25 = arith.mulf %23, %24 : vector<16x16xf32>
    %26 = math.exp %25 : vector<16x16xf32>
    %27 = arith.mulf %26, %0 : vector<16x16xf32>
    %cst_12 = arith.constant dense<0.000000e+00> : vector<16xf32>
    %28 = vector.multi_reduction <add>, %27, %cst_12 [1] : vector<16x16xf32> to vector<16xf32>
    %29 = vector.shape_cast %28 : vector<16xf32> to vector<1x16xf32>
    %30 = tpu.reciprocal %29 : vector<1x16xf32> -> vector<1x16xf32>
    %31 = vector.broadcast %30 : vector<1x16xf32> to vector<16x16xf32>
    %32 = arith.mulf %27, %31 : vector<16x16xf32>
    %33 = math.tanh %21 : vector<16x32xf32>
    %cst_13 = arith.constant dense<0.000000e+00> : vector<16x32xf32>
    %34 = tpu.matmul %32, %33, %cst_13 {dimension_numbers = #tpu.dot_dimension_numbers<[1], [0], [0], [1], [0, 0, 1, 1], [], []>} : vector<16x16xf32>, vector<16x32xf32>, vector<16x32xf32> -> vector<16x32xf32>
    %35 = arith.addf %20, %34 : vector<16x32xf32>
    %cst_14 = arith.constant dense<0.000000e+00> : vector<16x32xf32>
    %36 = tpu.matmul %0, %35, %cst_14 {dimension_numbers = #tpu.dot_dimension_numbers<[1], [0], [0], [1], [0, 0, 1, 1], [], []>} : vector<16x16xf32>, vector<16x32xf32>, vector<16x32xf32> -> vector<16x32xf32>
    %cst_15 = arith.constant 5.000000e-01 : f32
    %37 = vector.broadcast %cst_15 : f32 to vector<16x32xf32>
    %38 = arith.mulf %36, %37 : vector<16x32xf32>
    %c0_16 = arith.constant 0 : index
    %c0_17 = arith.constant 0 : index
    %39 = vector.load %arg3[%c0_16, %c0_17] : memref<32x128xf32, #tpu.memory_space<vmem>>, vector<32x128xf32>
    %cst_18 = arith.constant dense<0.000000e+00> : vector<16x128xf32>
    %40 = tpu.matmul %38, %39, %cst_18 {dimension_numbers = #tpu.dot_dimension_numbers<[1], [0], [0], [1], [0, 0, 1, 1], [], []>} : vector<16x32xf32>, vector<32x128xf32>, vector<16x128xf32> -> vector<16x128xf32>
    %41 = math.tanh %40 : vector<16x128xf32>
    %cst_19 = arith.constant 0.000000e+00 : f32
    %42 = vector.broadcast %cst_19 : f32 to vector<16x32xf32>
    %43 = vector.extract_strided_slice %41 {offsets = [0, 0], sizes = [16, 32], strides = [1, 1]} : vector<16x128xf32> to vector<16x32xf32>
    %44 = vector.extract_strided_slice %41 {offsets = [0, 64], sizes = [16, 32], strides = [1, 1]} : vector<16x128xf32> to vector<16x32xf32>
    %cst_20 = arith.constant dense<0.000000e+00> : vector<16x16xf32>
    %45 = tpu.matmul %44, %43, %cst_20 {dimension_numbers = #tpu.dot_dimension_numbers<[1], [1], [0], [0], [0, 0, 1, 0], [], []>} : vector<16x32xf32>, vector<16x32xf32>, vector<16x16xf32> -> vector<16x16xf32>
    %cst_21 = arith.constant 0.176776692 : f32
    %46 = vector.broadcast %cst_21 : f32 to vector<16x16xf32>
    %47 = arith.mulf %45, %46 : vector<16x16xf32>
    %48 = math.exp %47 : vector<16x16xf32>
    %49 = arith.mulf %48, %0 : vector<16x16xf32>
    %cst_22 = arith.constant dense<0.000000e+00> : vector<16xf32>
    %50 = vector.multi_reduction <add>, %49, %cst_22 [1] : vector<16x16xf32> to vector<16xf32>
    %51 = vector.shape_cast %50 : vector<16xf32> to vector<1x16xf32>
    %52 = tpu.reciprocal %51 : vector<1x16xf32> -> vector<1x16xf32>
    %53 = vector.broadcast %52 : vector<1x16xf32> to vector<16x16xf32>
    %54 = arith.mulf %49, %53 : vector<16x16xf32>
    %55 = math.tanh %43 : vector<16x32xf32>
    %cst_23 = arith.constant dense<0.000000e+00> : vector<16x32xf32>
    %56 = tpu.matmul %54, %55, %cst_23 {dimension_numbers = #tpu.dot_dimension_numbers<[1], [0], [0], [1], [0, 0, 1, 1], [], []>} : vector<16x16xf32>, vector<16x32xf32>, vector<16x32xf32> -> vector<16x32xf32>
    %57 = arith.addf %42, %56 : vector<16x32xf32>
    %58 = vector.extract_strided_slice %41 {offsets = [0, 32], sizes = [16, 32], strides = [1, 1]} : vector<16x128xf32> to vector<16x32xf32>
    %59 = vector.extract_strided_slice %41 {offsets = [0, 96], sizes = [16, 32], strides = [1, 1]} : vector<16x128xf32> to vector<16x32xf32>
    %cst_24 = arith.constant dense<0.000000e+00> : vector<16x16xf32>
    %60 = tpu.matmul %59, %58, %cst_24 {dimension_numbers = #tpu.dot_dimension_numbers<[1], [1], [0], [0], [0, 0, 1, 0], [], []>} : vector<16x32xf32>, vector<16x32xf32>, vector<16x16xf32> -> vector<16x16xf32>
    %cst_25 = arith.constant 0.176776692 : f32
    %61 = vector.broadcast %cst_25 : f32 to vector<16x16xf32>
    %62 = arith.mulf %60, %61 : vector<16x16xf32>
    %63 = math.exp %62 : vector<16x16xf32>
    %64 = arith.mulf %63, %0 : vector<16x16xf32>
    %cst_26 = arith.constant dense<0.000000e+00> : vector<16xf32>
    %65 = vector.multi_reduction <add>, %64, %cst_26 [1] : vector<16x16xf32> to vector<16xf32>
    %66 = vector.shape_cast %65 : vector<16xf32> to vector<1x16xf32>
    %67 = tpu.reciprocal %66 : vector<1x16xf32> -> vector<1x16xf32>
    %68 = vector.broadcast %67 : vector<1x16xf32> to vector<16x16xf32>
    %69 = arith.mulf %64, %68 : vector<16x16xf32>
    %70 = math.tanh %58 : vector<16x32xf32>
    %cst_27 = arith.constant dense<0.000000e+00> : vector<16x32xf32>
    %71 = tpu.matmul %69, %70, %cst_27 {dimension_numbers = #tpu.dot_dimension_numbers<[1], [0], [0], [1], [0, 0, 1, 1], [], []>} : vector<16x16xf32>, vector<16x32xf32>, vector<16x32xf32> -> vector<16x32xf32>
    %72 = arith.addf %57, %71 : vector<16x32xf32>
    %cst_28 = arith.constant dense<0.000000e+00> : vector<16x32xf32>
    %73 = tpu.matmul %0, %72, %cst_28 {dimension_numbers = #tpu.dot_dimension_numbers<[1], [0], [0], [1], [0, 0, 1, 1], [], []>} : vector<16x16xf32>, vector<16x32xf32>, vector<16x32xf32> -> vector<16x32xf32>
    %cst_29 = arith.constant 5.000000e-01 : f32
    %74 = vector.broadcast %cst_29 : f32 to vector<16x32xf32>
    %75 = arith.mulf %73, %74 : vector<16x32xf32>
    %c0_30 = arith.constant 0 : index
    %c0_31 = arith.constant 0 : index
    %76 = vector.load %arg4[%c0_30, %c0_31] : memref<32x256xf32, #tpu.memory_space<vmem>>, vector<32x256xf32>
    %cst_32 = arith.constant dense<0.000000e+00> : vector<16x256xf32>
    %77 = tpu.matmul %75, %76, %cst_32 {dimension_numbers = #tpu.dot_dimension_numbers<[1], [0], [0], [1], [0, 0, 1, 1], [], []>} : vector<16x32xf32>, vector<32x256xf32>, vector<16x256xf32> -> vector<16x256xf32>
    %78 = math.tanh %77 : vector<16x256xf32>
    %cst_33 = arith.constant 0.000000e+00 : f32
    %79 = vector.broadcast %cst_33 : f32 to vector<16x64xf32>
    %80 = vector.extract_strided_slice %78 {offsets = [0, 0], sizes = [16, 64], strides = [1, 1]} : vector<16x256xf32> to vector<16x64xf32>
    %81 = vector.extract_strided_slice %78 {offsets = [0, 128], sizes = [16, 64], strides = [1, 1]} : vector<16x256xf32> to vector<16x64xf32>
    %cst_34 = arith.constant dense<0.000000e+00> : vector<16x16xf32>
    %82 = tpu.matmul %81, %80, %cst_34 {dimension_numbers = #tpu.dot_dimension_numbers<[1], [1], [0], [0], [0, 0, 1, 0], [], []>} : vector<16x64xf32>, vector<16x64xf32>, vector<16x16xf32> -> vector<16x16xf32>
    %cst_35 = arith.constant 1.250000e-01 : f32
    %83 = vector.broadcast %cst_35 : f32 to vector<16x16xf32>
    %84 = arith.mulf %82, %83 : vector<16x16xf32>
    %85 = math.exp %84 : vector<16x16xf32>
    %86 = arith.mulf %85, %0 : vector<16x16xf32>
    %cst_36 = arith.constant dense<0.000000e+00> : vector<16xf32>
    %87 = vector.multi_reduction <add>, %86, %cst_36 [1] : vector<16x16xf32> to vector<16xf32>
    %88 = vector.shape_cast %87 : vector<16xf32> to vector<1x16xf32>
    %89 = tpu.reciprocal %88 : vector<1x16xf32> -> vector<1x16xf32>
    %90 = vector.broadcast %89 : vector<1x16xf32> to vector<16x16xf32>
    %91 = arith.mulf %86, %90 : vector<16x16xf32>
    %92 = math.tanh %80 : vector<16x64xf32>
    %cst_37 = arith.constant dense<0.000000e+00> : vector<16x64xf32>
    %93 = tpu.matmul %91, %92, %cst_37 {dimension_numbers = #tpu.dot_dimension_numbers<[1], [0], [0], [1], [0, 0, 1, 1], [], []>} : vector<16x16xf32>, vector<16x64xf32>, vector<16x64xf32> -> vector<16x64xf32>
    %94 = arith.addf %79, %93 : vector<16x64xf32>
    %95 = vector.extract_strided_slice %78 {offsets = [0, 64], sizes = [16, 64], strides = [1, 1]} : vector<16x256xf32> to vector<16x64xf32>
    %96 = vector.extract_strided_slice %78 {offsets = [0, 192], sizes = [16, 64], strides = [1, 1]} : vector<16x256xf32> to vector<16x64xf32>
    %cst_38 = arith.constant dense<0.000000e+00> : vector<16x16xf32>
    %97 = tpu.matmul %96, %95, %cst_38 {dimension_numbers = #tpu.dot_dimension_numbers<[1], [1], [0], [0], [0, 0, 1, 0], [], []>} : vector<16x64xf32>, vector<16x64xf32>, vector<16x16xf32> -> vector<16x16xf32>
    %cst_39 = arith.constant 1.250000e-01 : f32
    %98 = vector.broadcast %cst_39 : f32 to vector<16x16xf32>
    %99 = arith.mulf %97, %98 : vector<16x16xf32>
    %100 = math.exp %99 : vector<16x16xf32>
    %101 = arith.mulf %100, %0 : vector<16x16xf32>
    %cst_40 = arith.constant dense<0.000000e+00> : vector<16xf32>
    %102 = vector.multi_reduction <add>, %101, %cst_40 [1] : vector<16x16xf32> to vector<16xf32>
    %103 = vector.shape_cast %102 : vector<16xf32> to vector<1x16xf32>
    %104 = tpu.reciprocal %103 : vector<1x16xf32> -> vector<1x16xf32>
    %105 = vector.broadcast %104 : vector<1x16xf32> to vector<16x16xf32>
    %106 = arith.mulf %101, %105 : vector<16x16xf32>
    %107 = math.tanh %95 : vector<16x64xf32>
    %cst_41 = arith.constant dense<0.000000e+00> : vector<16x64xf32>
    %108 = tpu.matmul %106, %107, %cst_41 {dimension_numbers = #tpu.dot_dimension_numbers<[1], [0], [0], [1], [0, 0, 1, 1], [], []>} : vector<16x16xf32>, vector<16x64xf32>, vector<16x64xf32> -> vector<16x64xf32>
    %109 = arith.addf %94, %108 : vector<16x64xf32>
    %cst_42 = arith.constant dense<0.000000e+00> : vector<16x64xf32>
    %110 = tpu.matmul %0, %109, %cst_42 {dimension_numbers = #tpu.dot_dimension_numbers<[1], [0], [0], [1], [0, 0, 1, 1], [], []>} : vector<16x16xf32>, vector<16x64xf32>, vector<16x64xf32> -> vector<16x64xf32>
    %cst_43 = arith.constant 5.000000e-01 : f32
    %111 = vector.broadcast %cst_43 : f32 to vector<16x64xf32>
    %112 = arith.mulf %110, %111 : vector<16x64xf32>
    %c0_44 = arith.constant 0 : index
    %c0_45 = arith.constant 0 : index
    %113 = vector.load %arg5[%c0_44, %c0_45] : memref<16x64xf32, #tpu.memory_space<vmem>>, vector<16x64xf32>
    tpu.vector_store %arg5[%c0_44, %c0_45], %112 {strides = array<i32>} : memref<16x64xf32, #tpu.memory_space<vmem>>, vector<16x64xf32>,
    %cst_46 = arith.constant dense<0.000000e+00> : vector<16x16xf32>
    %114 = tpu.matmul %112, %112, %cst_46 {dimension_numbers = #tpu.dot_dimension_numbers<[1], [1], [0], [0], [0, 0, 1, 0], [], []>} : vector<16x64xf32>, vector<16x64xf32>, vector<16x16xf32> -> vector<16x16xf32>
    %115 = arith.negf %114 : vector<16x16xf32>
    %116 = math.exp %115 : vector<16x16xf32>
    %cst_47 = arith.constant 1.000000e+00 : f32
    %117 = vector.broadcast %cst_47 : f32 to vector<16x16xf32>
    %118 = arith.addf %117, %116 : vector<16x16xf32>
    %119 = arith.divf %117, %118 : vector<16x16xf32>
    %c0_48 = arith.constant 0 : index
    %c0_49 = arith.constant 0 : index
    %120 = vector.load %arg6[%c0_48, %c0_49] : memref<16x16xf32, #tpu.memory_space<vmem>>, vector<16x16xf32>
    tpu.vector_store %arg6[%c0_48, %c0_49], %119 {strides = array<i32>} : memref<16x16xf32, #tpu.memory_space<vmem>>, vector<16x16xf32>,
    return
  }
}

</mosaic_0001>

<llo_original>
// kernel: igae_decoder_forward.1
$region0: #{igae_decoder_forward.1}
  #allocation0 [shape = 'u32[]', space=smem, size = 0x4, offset = 0x4, fixed_abs, tag = 'smem constant byte address 0x4 - core index']
  #allocation1 [shape = 'u32[144,128]{1,0:T(1,128)}', space=vmem, size = 0x12000, scoped, tag = 'internal scratch']
  %s0 = inlined_call_operand.vmem [shape: f32[16,16], index: 0, kind: input, shape index: {}]
  %s1 = inlined_call_operand.vmem [shape: f32[16,16], index: 1, kind: input, shape index: {}]
  %s2 = inlined_call_operand.vmem [shape: f32[16,128], index: 2, kind: input, shape index: {}]
  %s3 = inlined_call_operand.vmem [shape: f32[32,128], index: 3, kind: input, shape index: {}]
  %s4 = inlined_call_operand.vmem [shape: f32[32,256], index: 4, kind: input, shape index: {}]
  %s5 = inlined_call_operand.hbm [shape: f32[16,64], index: 5, kind: output, shape index: {0}]
  %s6 = inlined_call_operand.hbm [shape: f32[16,16], index: 6, kind: output, shape index: {1}]
  %7 = xla_tuple %s5, %s6
  %s8 = sld [smem:[#allocation0]]
  $region38: #{igae_decoder_forward.1} parent=0
    _
  %s10 = ssub.s32 1, %s8
  %s11 = scalar_select 0, %s10, %s8
  $region1: #{igae_decoder_forward.1} parent=0
    #allocation2 [shape = 'u8[8192]{0}', space=vmem, size = 0x2000, scoped, tag = 'output window, operand 0, single buffered']
    #allocation3 [shape = 's32[1]{0}', space=sflag, size = 0x4, scoped, tag = 'scoped memory for igae_decoder_forward.1']
    #allocation4 [shape = 'u8[8192]{0}', space=vmem, size = 0x2000, scoped, tag = 'output window, operand 1, single buffered']
    #allocation5 [shape = 's32[1]{0}', space=sflag, size = 0x4, scoped, tag = 'scoped memory for igae_decoder_forward.1']
    %12 = vsyncpa [#allocation3], 0
    %13 = vsyncpa [#allocation5], 0
    // Predicated region
    $region2: #{igae_decoder_forward.1} parent=1 // pred_check
      _
    $region3: #{igae_decoder_forward.1} parent=1 // pred_check_branch
      %15 = sbr.rel (0) target = $region5
    $region4: #{igae_decoder_forward.1} parent=1 // pred_region
      _
    $region5: #{igae_decoder_forward.1} parent=1 // pred_fallthru
      _
    // Predicated region
    $region6: #{igae_decoder_forward.1} parent=1 // pred_check
      _
    $region7: #{igae_decoder_forward.1} parent=1 // pred_check_branch
      %17 = sbr.rel (0) target = $region9
    $region8: #{igae_decoder_forward.1} parent=1 // pred_region
      _
    $region9: #{igae_decoder_forward.1} parent=1 // pred_fallthru
      _
    // Predicated region
    $region10: #{igae_decoder_forward.1} parent=1 // pred_check
      _
    $region11: #{igae_decoder_forward.1} parent=1 // pred_check_branch
      %19 = sbr.rel (0) target = $region13
    $region12: #{igae_decoder_forward.1} parent=1 // pred_region
      _
    $region13: #{igae_decoder_forward.1} parent=1 // pred_fallthru
      _
    // Predicated region
    $region14: #{igae_decoder_forward.1} parent=1 // pred_check
      _
    $region15: #{igae_decoder_forward.1} parent=1 // pred_check_branch
      %21 = sbr.rel (0) target = $region17
    $region16: #{igae_decoder_forward.1} parent=1 // pred_region
      _
    $region17: #{igae_decoder_forward.1} parent=1 // pred_fallthru
      _
    // Predicated region
    $region18: #{igae_decoder_forward.1} parent=1 // pred_check
      _
    $region19: #{igae_decoder_forward.1} parent=1 // pred_check_branch
      %23 = sbr.rel (0) target = $region21
    $region20: #{igae_decoder_forward.1} parent=1 // pred_region
      _
    $region21: #{igae_decoder_forward.1} parent=1 // pred_fallthru
      _
    %v24 = vld [vmem:[%s1] sm:$0xff]
    %v25 = vld [vmem:[%s1 + $0x8] sm:$0xff]
    %v26 = vld [vmem:[%s0] sm:$0xff]
    %v27 = vld [vmem:[%s0 + $0x8] sm:$0xff]
    %v28 = vld [vmem:[%s2] sm:$0xff]
    %v29 = vld [vmem:[%s2 + $0x8] sm:$0xff]
    %vm30 = vcmask 130048
    %v32 = vsel %vm30, %v26, 0
    %v35 = vsel %vm30, %v27, 0
    %37 = vmatprep.subr.mxu0 0.0
    %38 = vmatpush1.msra.mxu0 0.0
    %39 = vmatprep.subr.mxu0 0.0
    %40 = vmatpush1.msra.mxu0 0.0
    %41 = vmatprep.subr.mxu0 0.0
    %42 = vmatpush1.msra.mxu0 0.0
    %43 = vmatprep.subr.mxu0 0.0
    %44 = vmatpush1.msra.mxu0 0.0
    %45 = vmatprep.subr.mxu0 0.0
    %46 = vmatpush1.msra.mxu0 0.0
    %47 = vmatprep.subr.mxu0 0.0
    %48 = vmatpush1.msra.mxu0 0.0
    %49 = vmatprep.subr.mxu0 0.0
    %50 = vmatpush1.msra.mxu0 0.0
    %51 = vmatprep.subr.mxu0 0.0
    %52 = vmatpush1.msra.mxu0 0.0
    %53 = vmatprep.subr.mxu0 0.0
    %54 = vmatpush1.msra.mxu0 0.0
    %55 = vmatprep.subr.mxu0 0.0
    %56 = vmatpush1.msra.mxu0 0.0
    %57 = vmatprep.subr.mxu0 0.0
    %58 = vmatpush1.msra.mxu0 0.0
    %59 = vmatprep.subr.mxu0 0.0
    %60 = vmatpush1.msra.mxu0 0.0
    %61 = vmatprep.subr.mxu0 0.0
    %62 = vmatpush1.msra.mxu0 0.0
    %63 = vmatprep.subr.mxu0 0.0
    %64 = vmatpush1.msra.mxu0 0.0
    %65 = vmatprep.subr.mxu0 0.0
    %66 = vmatpush1.msra.mxu0 %v29
    %67 = vmatprep.subr.mxu0 0.0
    %68 = vmatpush1.msra.mxu0 %v28
    %69 = vmatprep.subr.mxu0 0.0
    %70 = vmatpush2.msra.mxu0 0.0
    %71 = vmatprep.subr.mxu0 0.0
    %72 = vmatpush2.msra.mxu0 0.0
    %73 = vmatprep.subr.mxu0 0.0
    %74 = vmatpush2.msra.mxu0 0.0
    %75 = vmatprep.subr.mxu0 0.0
    %76 = vmatpush2.msra.mxu0 0.0
    %77 = vmatprep.subr.mxu0 0.0
    %78 = vmatpush2.msra.mxu0 0.0
    %79 = vmatprep.subr.mxu0 0.0
    %80 = vmatpush2.msra.mxu0 0.0
    %81 = vmatprep.subr.mxu0 0.0
    %82 = vmatpush2.msra.mxu0 0.0
    %83 = vmatprep.subr.mxu0 0.0
    %84 = vmatpush2.msra.mxu0 0.0
    %85 = vmatprep.subr.mxu0 0.0
    %86 = vmatpush2.msra.mxu0 0.0
    %87 = vmatprep.subr.mxu0 0.0
    %88 = vmatpush2.msra.mxu0 0.0
    %89 = vmatprep.subr.mxu0 0.0
    %90 = vmatpush2.msra.mxu0 0.0
    %91 = vmatprep.subr.mxu0 0.0
    %92 = vmatpush2.msra.mxu0 0.0
    %93 = vmatprep.subr.mxu0 0.0
    %94 = vmatpush2.msra.mxu0 0.0
    %95 = vmatprep.subr.mxu0 0.0
    %96 = vmatpush2.msra.mxu0 0.0
    %97 = vmatprep.subr.mxu0 0.0
    %98 = vmatpush2.msra.mxu0 0.0
    %99 = vmatprep.subr.mxu0 0.0
    %100 = vmatpush2.msra.mxu0 0.0
    %101 = vmatprep.mubr.f32.mxu0 0.0
    %102 = vmatmul.mubr.f32.gmra.mxu0 %v32
    %v103 = vpop.f32.mrf.mxu0
    %v104 = vadd.f32 0.0, %v103
    %v105 = vpop.f32.mrf.mxu0
    %106 = vmatprep.mubr.f32.mxu0 0.0
    %107 = vmatmul.mubr.f32.gmra.mxu0 %v35
    %v108 = vpop.f32.mrf.mxu0
    %v109 = vadd.f32 0.0, %v108
    %v110 = vpop.f32.mrf.mxu0
    %111 = vdwg.mxu0
    %v112 = vtanh.pop %v104
    %v113 = vtanh.pop %v109
    %116 = vrot.lane.b32.xlu0 %v112, 64
    %v117 = vpop.permute.xlu0 %116
    %118 = vrot.lane.b32.xlu0 %v113, 64
    %v119 = vpop.permute.xlu0 %118
    %vm120 = vcmask 261120
    %v121 = vsel %vm120, %v117, 0
    %v123 = vsel %vm120, %v119, 0
    %v125 = vsel %vm120, %v112, 0
    %v127 = vsel %vm120, %v113, 0
    %129 = vmatprep.subr.mxu0 0.0
    %130 = vmatpush1.xpose.msra.mxu0 0.0
    %131 = vmatprep.subr.mxu0 0.0
    %132 = vmatpush1.xpose.msra.mxu0 0.0
    %133 = vmatprep.subr.mxu0 0.0
    %134 = vmatpush1.xpose.msra.mxu0 0.0
    %135 = vmatprep.subr.mxu0 0.0
    %136 = vmatpush1.xpose.msra.mxu0 0.0
    %137 = vmatprep.subr.mxu0 0.0
    %138 = vmatpush1.xpose.msra.mxu0 0.0
    %139 = vmatprep.subr.mxu0 0.0
    %140 = vmatpush1.xpose.msra.mxu0 0.0
    %141 = vmatprep.subr.mxu0 0.0
    %142 = vmatpush1.xpose.msra.mxu0 0.0
    %143 = vmatprep.subr.mxu0 0.0
    %144 = vmatpush1.xpose.msra.mxu0 0.0
    %145 = vmatprep.subr.mxu0 0.0
    %146 = vmatpush1.xpose.msra.mxu0 0.0
    %147 = vmatprep.subr.mxu0 0.0
    %148 = vmatpush1.xpose.msra.mxu0 0.0
    %149 = vmatprep.subr.mxu0 0.0
    %150 = vmatpush1.xpose.msra.mxu0 0.0
    %151 = vmatprep.subr.mxu0 0.0
    %152 = vmatpush1.xpose.msra.mxu0 0.0
    %153 = vmatprep.subr.mxu0 0.0
    %154 = vmatpush1.xpose.msra.mxu0 0.0
    %155 = vmatprep.subr.mxu0 0.0
    %156 = vmatpush1.xpose.msra.mxu0 0.0
    %157 = vmatprep.subr.mxu0 0.0
    %158 = vmatpush1.xpose.msra.mxu0 %v127
    %159 = vmatprep.subr.mxu0 0.0
    %160 = vmatpush1.xpose.msra.mxu0 %v125
    %161 = vmatprep.subr.mxu0 0.0
    %162 = vmatpush2.xpose.msra.mxu0 0.0
    %163 = vmatprep.subr.mxu0 0.0
    %164 = vmatpush2.xpose.msra.mxu0 0.0
    %165 = vmatprep.subr.mxu0 0.0
    %166 = vmatpush2.xpose.msra.mxu0 0.0
    %167 = vmatprep.subr.mxu0 0.0
    %168 = vmatpush2.xpose.msra.mxu0 0.0
    %169 = vmatprep.subr.mxu0 0.0
    %170 = vmatpush2.xpose.msra.mxu0 0.0
    %171 = vmatprep.subr.mxu0 0.0
    %172 = vmatpush2.xpose.msra.mxu0 0.0
    %173 = vmatprep.subr.mxu0 0.0
    %174 = vmatpush2.xpose.msra.mxu0 0.0
    %175 = vmatprep.subr.mxu0 0.0
    %176 = vmatpush2.xpose.msra.mxu0 0.0
    %177 = vmatprep.subr.mxu0 0.0
    %178 = vmatpush2.xpose.msra.mxu0 0.0
    %179 = vmatprep.subr.mxu0 0.0
    %180 = vmatpush2.xpose.msra.mxu0 0.0
    %181 = vmatprep.subr.mxu0 0.0
    %182 = vmatpush2.xpose.msra.mxu0 0.0
    %183 = vmatprep.subr.mxu0 0.0
    %184 = vmatpush2.xpose.msra.mxu0 0.0
    %185 = vmatprep.subr.mxu0 0.0
    %186 = vmatpush2.xpose.msra.mxu0 0.0
    %187 = vmatprep.subr.mxu0 0.0
    %188 = vmatpush2.xpose.msra.mxu0 0.0
    %189 = vmatprep.subr.mxu0 0.0
    %190 = vmatpush2.xpose.msra.mxu0 0.0
    %191 = vmatprep.subr.mxu0 0.0
    %192 = vmatpush2.xpose.msra.mxu0 0.0
    %193 = vmatprep.mubr.f32.mxu0 0.0
    %194 = vmatmul.mubr.f32.gmra.mxu0 %v121
    %v195 = vpop.f32.mrf.mxu0
    %v196 = vadd.f32 0.0, %v195
    %v197 = vpop.f32.mrf.mxu0
    %198 = vmatprep.mubr.f32.mxu0 0.0
    %199 = vmatmul.mubr.f32.gmra.mxu0 %v123
    %v200 = vpop.f32.mrf.mxu0
    %v201 = vadd.f32 0.0, %v200
    %v202 = vpop.f32.mrf.mxu0
    %203 = vdwg.mxu0
    %v204 = vmul.f32 %v196, 0.17677669
    %v205 = vmul.f32 %v201, 0.17677669
    %v206 = vmul.f32 %v204, 1.442695
    %v207 = vpow.pop %v206
    %v208 = vmul.f32 %v205, 1.442695
    %v209 = vpow.pop %v208
    %v210 = vmul.f32 %v207, %v24
    %v211 = vmul.f32 %v209, %v25
    %v212 = vsel %vm30, %v210, 0.0
    %213 = vadd.xlane.f32.xlu0 %v212
    %v214 = vpop.xlane.xlu0 %213
    %v215 = vsel %vm30, %v211, 0.0
    %216 = vadd.xlane.f32.xlu0 %v215
    %v217 = vpop.xlane.xlu0 %216
    %v218 = vrcp.pop %v214
    %v219 = vrcp.pop %v217
    %v222 = vlaneseq
    %v223 = vand.u32 %v222, 127
    %v224 = vlaneseq
    %v225 = vshrl.u32 %v224, 7
    %v226 = vsub.s32 %v223, %v225
    %v227 = vrot.slane %v218, %v226
    %v228 = vadd.s32 %v223, 4294967288
    %v229 = vlaneseq
    %v230 = vshrl.u32 %v229, 7
    %v231 = vsub.s32 %v228, %v230
    %v232 = vrot.slane %v219, %v231
    %vm233 = vcmask 130112
    %v234 = vsel %vm233, %v232, %v227
    %vm235 = vcmask 1042434
    %v236 = vsel %vm235, %v234, %v234
    %vm237 = vcmask 1043459
    %v238 = vsel %vm237, %v234, %v236
    %vm239 = vcmask 1044484
    %v240 = vsel %vm239, %v234, %v238
    %vm241 = vcmask 1045509
    %v242 = vsel %vm241, %v234, %v240
    %vm243 = vcmask 1046534
    %v244 = vsel %vm243, %v234, %v242
    %vm245 = vcmask 1047559
    %v246 = vsel %vm245, %v234, %v244
    %v248 = vmul.f32 %v210, %v246
    %v249 = vmul.f32 %v211, %v246
    %v250 = vtanh.pop %v112
    %v251 = vtanh.pop %v113
    %252 = vrot.lane.b32.xlu0 %v112, 32
    %v253 = vpop.permute.xlu0 %252
    %254 = vrot.lane.b32.xlu0 %v113, 32
    %v255 = vpop.permute.xlu0 %254
    %256 = vrot.lane.b32.xlu0 %v112, 96
    %v257 = vpop.permute.xlu0 %256
    %258 = vrot.lane.b32.xlu0 %v113, 96
    %v259 = vpop.permute.xlu0 %258
    %v260 = vsel %vm120, %v253, 0
    %v262 = vsel %vm120, %v255, 0
    %v264 = vsel %vm120, %v257, 0
    %v266 = vsel %vm120, %v259, 0
    %268 = vmatprep.subr.mxu0 0.0
    %269 = vmatpush1.xpose.msra.mxu0 0.0
    %270 = vmatprep.subr.mxu0 0.0
    %271 = vmatpush1.xpose.msra.mxu0 0.0
    %272 = vmatprep.subr.mxu0 0.0
    %273 = vmatpush1.xpose.msra.mxu0 0.0
    %274 = vmatprep.subr.mxu0 0.0
    %275 = vmatpush1.xpose.msra.mxu0 0.0
    %276 = vmatprep.subr.mxu0 0.0
    %277 = vmatpush1.xpose.msra.mxu0 0.0
    %278 = vmatprep.subr.mxu0 0.0
    %279 = vmatpush1.xpose.msra.mxu0 0.0
    %280 = vmatprep.subr.mxu0 0.0
    %281 = vmatpush1.xpose.msra.mxu0 0.0
    %282 = vmatprep.subr.mxu0 0.0
    %283 = vmatpush1.xpose.msra.mxu0 0.0
    %284 = vmatprep.subr.mxu0 0.0
    %285 = vmatpush1.xpose.msra.mxu0 0.0
    %286 = vmatprep.subr.mxu0 0.0
    %287 = vmatpush1.xpose.msra.mxu0 0.0
    %288 = vmatprep.subr.mxu0 0.0
    %289 = vmatpush1.xpose.msra.mxu0 0.0
    %290 = vmatprep.subr.mxu0 0.0
    %291 = vmatpush1.xpose.msra.mxu0 0.0
    %292 = vmatprep.subr.mxu0 0.0
    %293 = vmatpush1.xpose.msra.mxu0 0.0
    %294 = vmatprep.subr.mxu0 0.0
    %295 = vmatpush1.xpose.msra.mxu0 0.0
    %296 = vmatprep.subr.mxu0 0.0
    %297 = vmatpush1.xpose.msra.mxu0 %v266
    %298 = vmatprep.subr.mxu0 0.0
    %299 = vmatpush1.xpose.msra.mxu0 %v264
    %300 = vmatprep.subr.mxu0 0.0
    %301 = vmatpush2.xpose.msra.mxu0 0.0
    %302 = vmatprep.subr.mxu0 0.0
    %303 = vmatpush2.xpose.msra.mxu0 0.0
    %304 = vmatprep.subr.mxu0 0.0
    %305 = vmatpush2.xpose.msra.mxu0 0.0
    %306 = vmatprep.subr.mxu0 0.0
    %307 = vmatpush2.xpose.msra.mxu0 0.0
    %308 = vmatprep.subr.mxu0 0.0
    %309 = vmatpush2.xpose.msra.mxu0 0.0
    %310 = vmatprep.subr.mxu0 0.0
    %311 = vmatpush2.xpose.msra.mxu0 0.0
    %312 = vmatprep.subr.mxu0 0.0
    %313 = vmatpush2.xpose.msra.mxu0 0.0
    %314 = vmatprep.subr.mxu0 0.0
    %315 = vmatpush2.xpose.msra.mxu0 0.0
    %316 = vmatprep.subr.mxu0 0.0
    %317 = vmatpush2.xpose.msra.mxu0 0.0
    %318 = vmatprep.subr.mxu0 0.0
    %319 = vmatpush2.xpose.msra.mxu0 0.0
    %320 = vmatprep.subr.mxu0 0.0
    %321 = vmatpush2.xpose.msra.mxu0 0.0
    %322 = vmatprep.subr.mxu0 0.0
    %323 = vmatpush2.xpose.msra.mxu0 0.0
    %324 = vmatprep.subr.mxu0 0.0
    %325 = vmatpush2.xpose.msra.mxu0 0.0
    %326 = vmatprep.subr.mxu0 0.0
    %327 = vmatpush2.xpose.msra.mxu0 0.0
    %328 = vmatprep.subr.mxu0 0.0
    %329 = vmatpush2.xpose.msra.mxu0 0.0
    %330 = vmatprep.subr.mxu0 0.0
    %331 = vmatpush2.xpose.msra.mxu0 0.0
    %332 = vmatprep.mubr.f32.mxu0 0.0
    %333 = vmatmul.mubr.f32.gmra.mxu0 %v260
    %v334 = vpop.f32.mrf.mxu0
    %v335 = vadd.f32 0.0, %v334
    %v336 = vpop.f32.mrf.mxu0
    %337 = vmatprep.mubr.f32.mxu0 0.0
    %338 = vmatmul.mubr.f32.gmra.mxu0 %v262
    %v339 = vpop.f32.mrf.mxu0
    %v340 = vadd.f32 0.0, %v339
    %v341 = vpop.f32.mrf.mxu0
    %342 = vdwg.mxu0
    %v343 = vmul.f32 %v335, 0.17677669
    %v344 = vmul.f32 %v340, 0.17677669
    %v345 = vmul.f32 %v343, 1.442695
    %v346 = vpow.pop %v345
    %v347 = vmul.f32 %v344, 1.442695
    %v348 = vpow.pop %v347
    %v349 = vmul.f32 %v346, %v24
    %v350 = vmul.f32 %v348, %v25
    %v351 = vsel %vm30, %v349, 0.0
    %352 = vadd.xlane.f32.xlu0 %v351
    %v353 = vpop.xlane.xlu0 %352
    %v354 = vsel %vm30, %v350, 0.0
    %355 = vadd.xlane.f32.xlu0 %v354
    %v356 = vpop.xlane.xlu0 %355
    %v357 = vrcp.pop %v353
    %v358 = vrcp.pop %v356
    %v361 = vlaneseq
    %v362 = vshrl.u32 %v361, 7
    %v363 = vsub.s32 %v223, %v362
    %v364 = vrot.slane %v357, %v363
    %v365 = vlaneseq
    %v366 = vshrl.u32 %v365, 7
    %v367 = vsub.s32 %v228, %v366
    %v368 = vrot.slane %v358, %v367
    %v369 = vsel %vm233, %v368, %v364
    %v370 = vsel %vm235, %v369, %v369
    %v371 = vsel %vm237, %v369, %v370
    %v372 = vsel %vm239, %v369, %v371
    %v373 = vsel %vm241, %v369, %v372
    %v374 = vsel %vm243, %v369, %v373
    %v375 = vsel %vm245, %v369, %v374
    %v377 = vmul.f32 %v349, %v375
    %v378 = vmul.f32 %v350, %v375
    %381 = vrot.lane.b32.xlu0 %v250, 96
    %v382 = vpop.permute.xlu0 %381
    %383 = vrot.lane.b32.xlu0 %v251, 96
    %v384 = vpop.permute.xlu0 %383
    %v388 = vsel %vm30, %v377, 0
    %v391 = vsel %vm30, %v378, 0
    %393 = vmatprep.subr.mxu0 0.0
    %394 = vmatpush1.msra.mxu0 0.0
    %395 = vmatprep.subr.mxu0 0.0
    %396 = vmatpush1.msra.mxu0 0.0
    %397 = vmatprep.subr.mxu0 0.0
    %398 = vmatpush1.msra.mxu0 0.0
    %399 = vmatprep.subr.mxu0 0.0
    %400 = vmatpush1.msra.mxu0 0.0
    %401 = vmatprep.subr.mxu0 0.0
    %402 = vmatpush1.msra.mxu0 0.0
    %403 = vmatprep.subr.mxu0 0.0
    %404 = vmatpush1.msra.mxu0 0.0
    %405 = vmatprep.subr.mxu0 0.0
    %406 = vmatpush1.msra.mxu0 0.0
    %407 = vmatprep.subr.mxu0 0.0
    %408 = vmatpush1.msra.mxu0 0.0
    %409 = vmatprep.subr.mxu0 0.0
    %410 = vmatpush1.msra.mxu0 0.0
    %411 = vmatprep.subr.mxu0 0.0
    %412 = vmatpush1.msra.mxu0 0.0
    %413 = vmatprep.subr.mxu0 0.0
    %414 = vmatpush1.msra.mxu0 0.0
    %415 = vmatprep.subr.mxu0 0.0
    %416 = vmatpush1.msra.mxu0 0.0
    %417 = vmatprep.subr.mxu0 0.0
    %418 = vmatpush1.msra.mxu0 0.0
    %419 = vmatprep.subr.mxu0 0.0
    %420 = vmatpush1.msra.mxu0 0.0
    %421 = vmatprep.subr.mxu0 0.0
    %422 = vmatpush1.msra.mxu0 %v384
    %423 = vmatprep.subr.mxu0 0.0
    %424 = vmatpush1.msra.mxu0 %v382
    %425 = vmatprep.subr.mxu0 0.0
    %426 = vmatpush2.msra.mxu0 0.0
    %427 = vmatprep.subr.mxu0 0.0
    %428 = vmatpush2.msra.mxu0 0.0
    %429 = vmatprep.subr.mxu0 0.0
    %430 = vmatpush2.msra.mxu0 0.0
    %431 = vmatprep.subr.mxu0 0.0
    %432 = vmatpush2.msra.mxu0 0.0
    %433 = vmatprep.subr.mxu0 0.0
    %434 = vmatpush2.msra.mxu0 0.0
    %435 = vmatprep.subr.mxu0 0.0
    %436 = vmatpush2.msra.mxu0 0.0
    %437 = vmatprep.subr.mxu0 0.0
    %438 = vmatpush2.msra.mxu0 0.0
    %439 = vmatprep.subr.mxu0 0.0
    %440 = vmatpush2.msra.mxu0 0.0
    %441 = vmatprep.subr.mxu0 0.0
    %442 = vmatpush2.msra.mxu0 0.0
    %443 = vmatprep.subr.mxu0 0.0
    %444 = vmatpush2.msra.mxu0 0.0
    %445 = vmatprep.subr.mxu0 0.0
    %446 = vmatpush2.msra.mxu0 0.0
    %447 = vmatprep.subr.mxu0 0.0
    %448 = vmatpush2.msra.mxu0 0.0
    %449 = vmatprep.subr.mxu0 0.0
    %450 = vmatpush2.msra.mxu0 0.0
    %451 = vmatprep.subr.mxu0 0.0
    %452 = vmatpush2.msra.mxu0 0.0
    %453 = vmatprep.subr.mxu0 0.0
    %454 = vmatpush2.msra.mxu0 0.0
    %455 = vmatprep.subr.mxu0 0.0
    %456 = vmatpush2.msra.mxu0 0.0
    %457 = vmatprep.mubr.f32.mxu0 0.0
    %458 = vmatmul.mubr.f32.gmra.mxu0 %v388
    %v459 = vpop.f32.mrf.mxu0
    %v460 = vadd.f32 0.0, %v459
    %v461 = vpop.f32.mrf.mxu0
    %462 = vmatprep.mubr.f32.mxu0 0.0
    %463 = vmatmul.mubr.f32.gmra.mxu0 %v391
    %v464 = vpop.f32.mrf.mxu0
    %v465 = vadd.f32 0.0, %v464
    %v466 = vpop.f32.mrf.mxu0
    %467 = vdwg.mxu0
    %v469 = vsel %vm30, %v248, 0
    %v472 = vsel %vm30, %v249, 0
    %474 = vmatprep.subr.mxu0 0.0
    %475 = vmatpush1.msra.mxu0 0.0
    %476 = vmatprep.subr.mxu0 0.0
    %477 = vmatpush1.msra.mxu0 0.0
    %478 = vmatprep.subr.mxu0 0.0
    %479 = vmatpush1.msra.mxu0 0.0
    %480 = vmatprep.subr.mxu0 0.0
    %481 = vmatpush1.msra.mxu0 0.0
    %482 = vmatprep.subr.mxu0 0.0
    %483 = vmatpush1.msra.mxu0 0.0
    %484 = vmatprep.subr.mxu0 0.0
    %485 = vmatpush1.msra.mxu0 0.0
    %486 = vmatprep.subr.mxu0 0.0
    %487 = vmatpush1.msra.mxu0 0.0
    %488 = vmatprep.subr.mxu0 0.0
    %489 = vmatpush1.msra.mxu0 0.0
    %490 = vmatprep.subr.mxu0 0.0
    %491 = vmatpush1.msra.mxu0 0.0
    %492 = vmatprep.subr.mxu0 0.0
    %493 = vmatpush1.msra.mxu0 0.0
    %494 = vmatprep.subr.mxu0 0.0
    %495 = vmatpush1.msra.mxu0 0.0
    %496 = vmatprep.subr.mxu0 0.0
    %497 = vmatpush1.msra.mxu0 0.0
    %498 = vmatprep.subr.mxu0 0.0
    %499 = vmatpush1.msra.mxu0 0.0
    %500 = vmatprep.subr.mxu0 0.0
    %501 = vmatpush1.msra.mxu0 0.0
    %502 = vmatprep.subr.mxu0 0.0
    %503 = vmatpush1.msra.mxu0 %v251
    %504 = vmatprep.subr.mxu0 0.0
    %505 = vmatpush1.msra.mxu0 %v250
    %506 = vmatprep.subr.mxu0 0.0
    %507 = vmatpush2.msra.mxu0 0.0
    %508 = vmatprep.subr.mxu0 0.0
    %509 = vmatpush2.msra.mxu0 0.0
    %510 = vmatprep.subr.mxu0 0.0
    %511 = vmatpush2.msra.mxu0 0.0
    %512 = vmatprep.subr.mxu0 0.0
    %513 = vmatpush2.msra.mxu0 0.0
    %514 = vmatprep.subr.mxu0 0.0
    %515 = vmatpush2.msra.mxu0 0.0
    %516 = vmatprep.subr.mxu0 0.0
    %517 = vmatpush2.msra.mxu0 0.0
    %518 = vmatprep.subr.mxu0 0.0
    %519 = vmatpush2.msra.mxu0 0.0
    %520 = vmatprep.subr.mxu0 0.0
    %521 = vmatpush2.msra.mxu0 0.0
    %522 = vmatprep.subr.mxu0 0.0
    %523 = vmatpush2.msra.mxu0 0.0
    %524 = vmatprep.subr.mxu0 0.0
    %525 = vmatpush2.msra.mxu0 0.0
    %526 = vmatprep.subr.mxu0 0.0
    %527 = vmatpush2.msra.mxu0 0.0
    %528 = vmatprep.subr.mxu0 0.0
    %529 = vmatpush2.msra.mxu0 0.0
    %530 = vmatprep.subr.mxu0 0.0
    %531 = vmatpush2.msra.mxu0 0.0
    %532 = vmatprep.subr.mxu0 0.0
    %533 = vmatpush2.msra.mxu0 0.0
    %534 = vmatprep.subr.mxu0 0.0
    %535 = vmatpush2.msra.mxu0 0.0
    %536 = vmatprep.subr.mxu0 0.0
    %537 = vmatpush2.msra.mxu0 0.0
    %538 = vmatprep.mubr.f32.mxu0 0.0
    %539 = vmatmul.mubr.f32.gmra.mxu0 %v469
    %v540 = vpop.f32.mrf.mxu0
    %v541 = vadd.f32 %v460, %v540
    %v542 = vpop.f32.mrf.mxu0
    %543 = vmatprep.mubr.f32.mxu0 0.0
    %544 = vmatmul.mubr.f32.gmra.mxu0 %v472
    %v545 = vpop.f32.mrf.mxu0
    %v546 = vadd.f32 %v465, %v545
    %v547 = vpop.f32.mrf.mxu0
    %548 = vdwg.mxu0
    %v550 = vsel %vm30, %v24, 0
    %v553 = vsel %vm30, %v25, 0
    %555 = vmatprep.subr.mxu0 0.0
    %556 = vmatpush1.msra.mxu0 0.0
    %557 = vmatprep.subr.mxu0 0.0
    %558 = vmatpush1.msra.mxu0 0.0
    %559 = vmatprep.subr.mxu0 0.0
    %560 = vmatpush1.msra.mxu0 0.0
    %561 = vmatprep.subr.mxu0 0.0
    %562 = vmatpush1.msra.mxu0 0.0
    %563 = vmatprep.subr.mxu0 0.0
    %564 = vmatpush1.msra.mxu0 0.0
    %565 = vmatprep.subr.mxu0 0.0
    %566 = vmatpush1.msra.mxu0 0.0
    %567 = vmatprep.subr.mxu0 0.0
    %568 = vmatpush1.msra.mxu0 0.0
    %569 = vmatprep.subr.mxu0 0.0
    %570 = vmatpush1.msra.mxu0 0.0
    %571 = vmatprep.subr.mxu0 0.0
    %572 = vmatpush1.msra.mxu0 0.0
    %573 = vmatprep.subr.mxu0 0.0
    %574 = vmatpush1.msra.mxu0 0.0
    %575 = vmatprep.subr.mxu0 0.0
    %576 = vmatpush1.msra.mxu0 0.0
    %577 = vmatprep.subr.mxu0 0.0
    %578 = vmatpush1.msra.mxu0 0.0
    %579 = vmatprep.subr.mxu0 0.0
    %580 = vmatpush1.msra.mxu0 0.0
    %581 = vmatprep.subr.mxu0 0.0
    %582 = vmatpush1.msra.mxu0 0.0
    %583 = vmatprep.subr.mxu0 0.0
    %584 = vmatpush1.msra.mxu0 %v546
    %585 = vmatprep.subr.mxu0 0.0
    %586 = vmatpush1.msra.mxu0 %v541
    %587 = vmatprep.subr.mxu0 0.0
    %588 = vmatpush2.msra.mxu0 0.0
    %589 = vmatprep.subr.mxu0 0.0
    %590 = vmatpush2.msra.mxu0 0.0
    %591 = vmatprep.subr.mxu0 0.0
    %592 = vmatpush2.msra.mxu0 0.0
    %593 = vmatprep.subr.mxu0 0.0
    %594 = vmatpush2.msra.mxu0 0.0
    %595 = vmatprep.subr.mxu0 0.0
    %596 = vmatpush2.msra.mxu0 0.0
    %597 = vmatprep.subr.mxu0 0.0
    %598 = vmatpush2.msra.mxu0 0.0
    %599 = vmatprep.subr.mxu0 0.0
    %600 = vmatpush2.msra.mxu0 0.0
    %601 = vmatprep.subr.mxu0 0.0
    %602 = vmatpush2.msra.mxu0 0.0
    %603 = vmatprep.subr.mxu0 0.0
    %604 = vmatpush2.msra.mxu0 0.0
    %605 = vmatprep.subr.mxu0 0.0
    %606 = vmatpush2.msra.mxu0 0.0
    %607 = vmatprep.subr.mxu0 0.0
    %608 = vmatpush2.msra.mxu0 0.0
    %609 = vmatprep.subr.mxu0 0.0
    %610 = vmatpush2.msra.mxu0 0.0
    %611 = vmatprep.subr.mxu0 0.0
    %612 = vmatpush2.msra.mxu0 0.0
    %613 = vmatprep.subr.mxu0 0.0
    %614 = vmatpush2.msra.mxu0 0.0
    %615 = vmatprep.subr.mxu0 0.0
    %616 = vmatpush2.msra.mxu0 0.0
    %617 = vmatprep.subr.mxu0 0.0
    %618 = vmatpush2.msra.mxu0 0.0
    %619 = vmatprep.mubr.f32.mxu0 0.0
    %620 = vmatmul.mubr.f32.gmra.mxu0 %v550
    %v621 = vpop.f32.mrf.mxu0
    %v622 = vadd.f32 0.0, %v621
    %v623 = vpop.f32.mrf.mxu0
    %624 = vmatprep.mubr.f32.mxu0 0.0
    %625 = vmatmul.mubr.f32.gmra.mxu0 %v553
    %v626 = vpop.f32.mrf.mxu0
    %v627 = vadd.f32 0.0, %v626
    %v628 = vpop.f32.mrf.mxu0
    %629 = vdwg.mxu0
    %v630 = vmul.f32 %v622, 0.5
    %v631 = vmul.f32 %v627, 0.5
    %v632 = vld [vmem:[%s3] sm:$0xff]
    %v633 = vld [vmem:[%s3 + $0x8] sm:$0xff]
    %v634 = vld [vmem:[%s3 + $0x10] sm:$0xff]
    %v635 = vld [vmem:[%s3 + $0x18] sm:$0xff]
    %v637 = vsel %vm120, %v630, 0
    %v640 = vsel %vm120, %v631, 0
    %642 = vmatprep.subr.mxu0 0.0
    %643 = vmatpush1.msra.mxu0 0.0
    %644 = vmatprep.subr.mxu0 0.0
    %645 = vmatpush1.msra.mxu0 0.0
    %646 = vmatprep.subr.mxu0 0.0
    %647 = vmatpush1.msra.mxu0 0.0
    %648 = vmatprep.subr.mxu0 0.0
    %649 = vmatpush1.msra.mxu0 0.0
    %650 = vmatprep.subr.mxu0 0.0
    %651 = vmatpush1.msra.mxu0 0.0
    %652 = vmatprep.subr.mxu0 0.0
    %653 = vmatpush1.msra.mxu0 0.0
    %654 = vmatprep.subr.mxu0 0.0
    %655 = vmatpush1.msra.mxu0 0.0
    %656 = vmatprep.subr.mxu0 0.0
    %657 = vmatpush1.msra.mxu0 0.0
    %658 = vmatprep.subr.mxu0 0.0
    %659 = vmatpush1.msra.mxu0 0.0
    %660 = vmatprep.subr.mxu0 0.0
    %661 = vmatpush1.msra.mxu0 0.0
    %662 = vmatprep.subr.mxu0 0.0
    %663 = vmatpush1.msra.mxu0 0.0
    %664 = vmatprep.subr.mxu0 0.0
    %665 = vmatpush1.msra.mxu0 0.0
    %666 = vmatprep.subr.mxu0 0.0
    %667 = vmatpush1.msra.mxu0 %v635
    %668 = vmatprep.subr.mxu0 0.0
    %669 = vmatpush1.msra.mxu0 %v634
    %670 = vmatprep.subr.mxu0 0.0
    %671 = vmatpush1.msra.mxu0 %v633
    %672 = vmatprep.subr.mxu0 0.0
    %673 = vmatpush1.msra.mxu0 %v632
    %674 = vmatprep.subr.mxu0 0.0
    %675 = vmatpush2.msra.mxu0 0.0
    %676 = vmatprep.subr.mxu0 0.0
    %677 = vmatpush2.msra.mxu0 0.0
    %678 = vmatprep.subr.mxu0 0.0
    %679 = vmatpush2.msra.mxu0 0.0
    %680 = vmatprep.subr.mxu0 0.0
    %681 = vmatpush2.msra.mxu0 0.0
    %682 = vmatprep.subr.mxu0 0.0
    %683 = vmatpush2.msra.mxu0 0.0
    %684 = vmatprep.subr.mxu0 0.0
    %685 = vmatpush2.msra.mxu0 0.0
    %686 = vmatprep.subr.mxu0 0.0
    %687 = vmatpush2.msra.mxu0 0.0
    %688 = vmatprep.subr.mxu0 0.0
    %689 = vmatpush2.msra.mxu0 0.0
    %690 = vmatprep.subr.mxu0 0.0
    %691 = vmatpush2.msra.mxu0 0.0
    %692 = vmatprep.subr.mxu0 0.0
    %693 = vmatpush2.msra.mxu0 0.0
    %694 = vmatprep.subr.mxu0 0.0
    %695 = vmatpush2.msra.mxu0 0.0
    %696 = vmatprep.subr.mxu0 0.0
    %697 = vmatpush2.msra.mxu0 0.0
    %698 = vmatprep.subr.mxu0 0.0
    %699 = vmatpush2.msra.mxu0 0.0
    %700 = vmatprep.subr.mxu0 0.0
    %701 = vmatpush2.msra.mxu0 0.0
    %702 = vmatprep.subr.mxu0 0.0
    %703 = vmatpush2.msra.mxu0 0.0
    %704 = vmatprep.subr.mxu0 0.0
    %705 = vmatpush2.msra.mxu0 0.0
    %706 = vmatprep.mubr.f32.mxu0 0.0
    %707 = vmatmul.mubr.f32.gmra.mxu0 %v637
    %v708 = vpop.f32.mrf.mxu0
    %v709 = vadd.f32 0.0, %v708
    %v710 = vpop.f32.mrf.mxu0
    %711 = vmatprep.mubr.f32.mxu0 0.0
    %712 = vmatmul.mubr.f32.gmra.mxu0 %v640
    %v713 = vpop.f32.mrf.mxu0
    %v714 = vadd.f32 0.0, %v713
    %v715 = vpop.f32.mrf.mxu0
    %716 = vdwg.mxu0
    %v717 = vtanh.pop %v709
    %v718 = vtanh.pop %v714
    %721 = vrot.lane.b32.xlu0 %v717, 64
    %v722 = vpop.permute.xlu0 %721
    %723 = vrot.lane.b32.xlu0 %v718, 64
    %v724 = vpop.permute.xlu0 %723
    %v725 = vsel %vm120, %v722, 0
    %v727 = vsel %vm120, %v724, 0
    %v729 = vsel %vm120, %v717, 0
    %v731 = vsel %vm120, %v718, 0
    %733 = vmatprep.subr.mxu0 0.0
    %734 = vmatpush1.xpose.msra.mxu0 0.0
    %735 = vmatprep.subr.mxu0 0.0
    %736 = vmatpush1.xpose.msra.mxu0 0.0
    %737 = vmatprep.subr.mxu0 0.0
    %738 = vmatpush1.xpose.msra.mxu0 0.0
    %739 = vmatprep.subr.mxu0 0.0
    %740 = vmatpush1.xpose.msra.mxu0 0.0
    %741 = vmatprep.subr.mxu0 0.0
    %742 = vmatpush1.xpose.msra.mxu0 0.0
    %743 = vmatprep.subr.mxu0 0.0
    %744 = vmatpush1.xpose.msra.mxu0 0.0
    %745 = vmatprep.subr.mxu0 0.0
    %746 = vmatpush1.xpose.msra.mxu0 0.0
    %747 = vmatprep.subr.mxu0 0.0
    %748 = vmatpush1.xpose.msra.mxu0 0.0
    %749 = vmatprep.subr.mxu0 0.0
    %750 = vmatpush1.xpose.msra.mxu0 0.0
    %751 = vmatprep.subr.mxu0 0.0
    %752 = vmatpush1.xpose.msra.mxu0 0.0
    %753 = vmatprep.subr.mxu0 0.0
    %754 = vmatpush1.xpose.msra.mxu0 0.0
    %755 = vmatprep.subr.mxu0 0.0
    %756 = vmatpush1.xpose.msra.mxu0 0.0
    %757 = vmatprep.subr.mxu0 0.0
    %758 = vmatpush1.xpose.msra.mxu0 0.0
    %759 = vmatprep.subr.mxu0 0.0
    %760 = vmatpush1.xpose.msra.mxu0 0.0
    %761 = vmatprep.subr.mxu0 0.0
    %762 = vmatpush1.xpose.msra.mxu0 %v731
    %763 = vmatprep.subr.mxu0 0.0
    %764 = vmatpush1.xpose.msra.mxu0 %v729
    %765 = vmatprep.subr.mxu0 0.0
    %766 = vmatpush2.xpose.msra.mxu0 0.0
    %767 = vmatprep.subr.mxu0 0.0
    %768 = vmatpush2.xpose.msra.mxu0 0.0
    %769 = vmatprep.subr.mxu0 0.0
    %770 = vmatpush2.xpose.msra.mxu0 0.0
    %771 = vmatprep.subr.mxu0 0.0
    %772 = vmatpush2.xpose.msra.mxu0 0.0
    %773 = vmatprep.subr.mxu0 0.0
    %774 = vmatpush2.xpose.msra.mxu0 0.0
    %775 = vmatprep.subr.mxu0 0.0
    %776 = vmatpush2.xpose.msra.mxu0 0.0
    %777 = vmatprep.subr.mxu0 0.0
    %778 = vmatpush2.xpose.msra.mxu0 0.0
    %779 = vmatprep.subr.mxu0 0.0
    %780 = vmatpush2.xpose.msra.mxu0 0.0
    %781 = vmatprep.subr.mxu0 0.0
    %782 = vmatpush2.xpose.msra.mxu0 0.0
    %783 = vmatprep.subr.mxu0 0.0
    %784 = vmatpush2.xpose.msra.mxu0 0.0
    %785 = vmatprep.subr.mxu0 0.0
    %786 = vmatpush2.xpose.msra.mxu0 0.0
    %787 = vmatprep.subr.mxu0 0.0
    %788 = vmatpush2.xpose.msra.mxu0 0.0
    %789 = vmatprep.subr.mxu0 0.0
    %790 = vmatpush2.xpose.msra.mxu0 0.0
    %791 = vmatprep.subr.mxu0 0.0
    %792 = vmatpush2.xpose.msra.mxu0 0.0
    %793 = vmatprep.subr.mxu0 0.0
    %794 = vmatpush2.xpose.msra.mxu0 0.0
    %795 = vmatprep.subr.mxu0 0.0
    %796 = vmatpush2.xpose.msra.mxu0 0.0
    %797 = vmatprep.mubr.f32.mxu0 0.0
    %798 = vmatmul.mubr.f32.gmra.mxu0 %v725
    %v799 = vpop.f32.mrf.mxu0
    %v800 = vadd.f32 0.0, %v799
    %v801 = vpop.f32.mrf.mxu0
    %802 = vmatprep.mubr.f32.mxu0 0.0
    %803 = vmatmul.mubr.f32.gmra.mxu0 %v727
    %v804 = vpop.f32.mrf.mxu0
    %v805 = vadd.f32 0.0, %v804
    %v806 = vpop.f32.mrf.mxu0
    %807 = vdwg.mxu0
    %v808 = vmul.f32 %v800, 0.17677669
    %v809 = vmul.f32 %v805, 0.17677669
    %v810 = vmul.f32 %v808, 1.442695
    %v811 = vpow.pop %v810
    %v812 = vmul.f32 %v809, 1.442695
    %v813 = vpow.pop %v812
    %v814 = vmul.f32 %v811, %v24
    %v815 = vmul.f32 %v813, %v25
    %v816 = vsel %vm30, %v814, 0.0
    %817 = vadd.xlane.f32.xlu0 %v816
    %v818 = vpop.xlane.xlu0 %817
    %v819 = vsel %vm30, %v815, 0.0
    %820 = vadd.xlane.f32.xlu0 %v819
    %v821 = vpop.xlane.xlu0 %820
    %v822 = vrcp.pop %v818
    %v823 = vrcp.pop %v821
    %v826 = vlaneseq
    %v827 = vshrl.u32 %v826, 7
    %v828 = vsub.s32 %v223, %v827
    %v829 = vrot.slane %v822, %v828
    %v830 = vlaneseq
    %v831 = vshrl.u32 %v830, 7
    %v832 = vsub.s32 %v228, %v831
    %v833 = vrot.slane %v823, %v832
    %v834 = vsel %vm233, %v833, %v829
    %v835 = vsel %vm235, %v834, %v834
    %v836 = vsel %vm237, %v834, %v835
    %v837 = vsel %vm239, %v834, %v836
    %v838 = vsel %vm241, %v834, %v837
    %v839 = vsel %vm243, %v834, %v838
    %v840 = vsel %vm245, %v834, %v839
    %v842 = vmul.f32 %v814, %v840
    %v843 = vmul.f32 %v815, %v840
    %v844 = vtanh.pop %v717
    %v845 = vtanh.pop %v718
    %846 = vrot.lane.b32.xlu0 %v717, 32
    %v847 = vpop.permute.xlu0 %846
    %848 = vrot.lane.b32.xlu0 %v718, 32
    %v849 = vpop.permute.xlu0 %848
    %850 = vrot.lane.b32.xlu0 %v717, 96
    %v851 = vpop.permute.xlu0 %850
    %852 = vrot.lane.b32.xlu0 %v718, 96
    %v853 = vpop.permute.xlu0 %852
    %v854 = vsel %vm120, %v847, 0
    %v856 = vsel %vm120, %v849, 0
    %v858 = vsel %vm120, %v851, 0
    %v860 = vsel %vm120, %v853, 0
    %862 = vmatprep.subr.mxu0 0.0
    %863 = vmatpush1.xpose.msra.mxu0 0.0
    %864 = vmatprep.subr.mxu0 0.0
    %865 = vmatpush1.xpose.msra.mxu0 0.0
    %866 = vmatprep.subr.mxu0 0.0
    %867 = vmatpush1.xpose.msra.mxu0 0.0
    %868 = vmatprep.subr.mxu0 0.0
    %869 = vmatpush1.xpose.msra.mxu0 0.0
    %870 = vmatprep.subr.mxu0 0.0
    %871 = vmatpush1.xpose.msra.mxu0 0.0
    %872 = vmatprep.subr.mxu0 0.0
    %873 = vmatpush1.xpose.msra.mxu0 0.0
    %874 = vmatprep.subr.mxu0 0.0
    %875 = vmatpush1.xpose.msra.mxu0 0.0
    %876 = vmatprep.subr.mxu0 0.0
    %877 = vmatpush1.xpose.msra.mxu0 0.0
    %878 = vmatprep.subr.mxu0 0.0
    %879 = vmatpush1.xpose.msra.mxu0 0.0
    %880 = vmatprep.subr.mxu0 0.0
    %881 = vmatpush1.xpose.msra.mxu0 0.0
    %882 = vmatprep.subr.mxu0 0.0
    %883 = vmatpush1.xpose.msra.mxu0 0.0
    %884 = vmatprep.subr.mxu0 0.0
    %885 = vmatpush1.xpose.msra.mxu0 0.0
    %886 = vmatprep.subr.mxu0 0.0
    %887 = vmatpush1.xpose.msra.mxu0 0.0
    %888 = vmatprep.subr.mxu0 0.0
    %889 = vmatpush1.xpose.msra.mxu0 0.0
    %890 = vmatprep.subr.mxu0 0.0
    %891 = vmatpush1.xpose.msra.mxu0 %v860
    %892 = vmatprep.subr.mxu0 0.0
    %893 = vmatpush1.xpose.msra.mxu0 %v858
    %894 = vmatprep.subr.mxu0 0.0
    %895 = vmatpush2.xpose.msra.mxu0 0.0
    %896 = vmatprep.subr.mxu0 0.0
    %897 = vmatpush2.xpose.msra.mxu0 0.0
    %898 = vmatprep.subr.mxu0 0.0
    %899 = vmatpush2.xpose.msra.mxu0 0.0
    %900 = vmatprep.subr.mxu0 0.0
    %901 = vmatpush2.xpose.msra.mxu0 0.0
    %902 = vmatprep.subr.mxu0 0.0
    %903 = vmatpush2.xpose.msra.mxu0 0.0
    %904 = vmatprep.subr.mxu0 0.0
    %905 = vmatpush2.xpose.msra.mxu0 0.0
    %906 = vmatprep.subr.mxu0 0.0
    %907 = vmatpush2.xpose.msra.mxu0 0.0
    %908 = vmatprep.subr.mxu0 0.0
    %909 = vmatpush2.xpose.msra.mxu0 0.0
    %910 = vmatprep.subr.mxu0 0.0
    %911 = vmatpush2.xpose.msra.mxu0 0.0
    %912 = vmatprep.subr.mxu0 0.0
    %913 = vmatpush2.xpose.msra.mxu0 0.0
    %914 = vmatprep.subr.mxu0 0.0
    %915 = vmatpush2.xpose.msra.mxu0 0.0
    %916 = vmatprep.subr.mxu0 0.0
    %917 = vmatpush2.xpose.msra.mxu0 0.0
    %918 = vmatprep.subr.mxu0 0.0
    %919 = vmatpush2.xpose.msra.mxu0 0.0
    %920 = vmatprep.subr.mxu0 0.0
    %921 = vmatpush2.xpose.msra.mxu0 0.0
    %922 = vmatprep.subr.mxu0 0.0
    %923 = vmatpush2.xpose.msra.mxu0 0.0
    %924 = vmatprep.subr.mxu0 0.0
    %925 = vmatpush2.xpose.msra.mxu0 0.0
    %926 = vmatprep.mubr.f32.mxu0 0.0
    %927 = vmatmul.mubr.f32.gmra.mxu0 %v854
    %v928 = vpop.f32.mrf.mxu0
    %v929 = vadd.f32 0.0, %v928
    %v930 = vpop.f32.mrf.mxu0
    %931 = vmatprep.mubr.f32.mxu0 0.0
    %932 = vmatmul.mubr.f32.gmra.mxu0 %v856
    %v933 = vpop.f32.mrf.mxu0
    %v934 = vadd.f32 0.0, %v933
    %v935 = vpop.f32.mrf.mxu0
    %936 = vdwg.mxu0
    %v937 = vmul.f32 %v929, 0.17677669
    %v938 = vmul.f32 %v934, 0.17677669
    %v939 = vmul.f32 %v937, 1.442695
    %v940 = vpow.pop %v939
    %v941 = vmul.f32 %v938, 1.442695
    %v942 = vpow.pop %v941
    %v943 = vmul.f32 %v940, %v24
    %v944 = vmul.f32 %v942, %v25
    %v945 = vsel %vm30, %v943, 0.0
    %946 = vadd.xlane.f32.xlu0 %v945
    %v947 = vpop.xlane.xlu0 %946
    %v948 = vsel %vm30, %v944, 0.0
    %949 = vadd.xlane.f32.xlu0 %v948
    %v950 = vpop.xlane.xlu0 %949
    %v951 = vrcp.pop %v947
    %v952 = vrcp.pop %v950
    %v955 = vlaneseq
    %v956 = vshrl.u32 %v955, 7
    %v957 = vsub.s32 %v223, %v956
    %v958 = vrot.slane %v951, %v957
    %v959 = vlaneseq
    %v960 = vshrl.u32 %v959, 7
    %v961 = vsub.s32 %v228, %v960
    %v962 = vrot.slane %v952, %v961
    %v963 = vsel %vm233, %v962, %v958
    %v964 = vsel %vm235, %v963, %v963
    %v965 = vsel %vm237, %v963, %v964
    %v966 = vsel %vm239, %v963, %v965
    %v967 = vsel %vm241, %v963, %v966
    %v968 = vsel %vm243, %v963, %v967
    %v969 = vsel %vm245, %v963, %v968
    %v971 = vmul.f32 %v943, %v969
    %v972 = vmul.f32 %v944, %v969
    %975 = vrot.lane.b32.xlu0 %v844, 96
    %v976 = vpop.permute.xlu0 %975
    %977 = vrot.lane.b32.xlu0 %v845, 96
    %v978 = vpop.permute.xlu0 %977
    %v982 = vsel %vm30, %v971, 0
    %v985 = vsel %vm30, %v972, 0
    %987 = vmatprep.subr.mxu0 0.0
    %988 = vmatpush1.msra.mxu0 0.0
    %989 = vmatprep.subr.mxu0 0.0
    %990 = vmatpush1.msra.mxu0 0.0
    %991 = vmatprep.subr.mxu0 0.0
    %992 = vmatpush1.msra.mxu0 0.0
    %993 = vmatprep.subr.mxu0 0.0
    %994 = vmatpush1.msra.mxu0 0.0
    %995 = vmatprep.subr.mxu0 0.0
    %996 = vmatpush1.msra.mxu0 0.0
    %997 = vmatprep.subr.mxu0 0.0
    %998 = vmatpush1.msra.mxu0 0.0
    %999 = vmatprep.subr.mxu0 0.0
    %1000 = vmatpush1.msra.mxu0 0.0
    %1001 = vmatprep.subr.mxu0 0.0
    %1002 = vmatpush1.msra.mxu0 0.0
    %1003 = vmatprep.subr.mxu0 0.0
    %1004 = vmatpush1.msra.mxu0 0.0
    %1005 = vmatprep.subr.mxu0 0.0
    %1006 = vmatpush1.msra.mxu0 0.0
    %1007 = vmatprep.subr.mxu0 0.0
    %1008 = vmatpush1.msra.mxu0 0.0
    %1009 = vmatprep.subr.mxu0 0.0
    %1010 = vmatpush1.msra.mxu0 0.0
    %1011 = vmatprep.subr.mxu0 0.0
    %1012 = vmatpush1.msra.mxu0 0.0
    %1013 = vmatprep.subr.mxu0 0.0
    %1014 = vmatpush1.msra.mxu0 0.0
    %1015 = vmatprep.subr.mxu0 0.0
    %1016 = vmatpush1.msra.mxu0 %v978
    %1017 = vmatprep.subr.mxu0 0.0
    %1018 = vmatpush1.msra.mxu0 %v976
    %1019 = vmatprep.subr.mxu0 0.0
    %1020 = vmatpush2.msra.mxu0 0.0
    %1021 = vmatprep.subr.mxu0 0.0
    %1022 = vmatpush2.msra.mxu0 0.0
    %1023 = vmatprep.subr.mxu0 0.0
    %1024 = vmatpush2.msra.mxu0 0.0
    %1025 = vmatprep.subr.mxu0 0.0
    %1026 = vmatpush2.msra.mxu0 0.0
    %1027 = vmatprep.subr.mxu0 0.0
    %1028 = vmatpush2.msra.mxu0 0.0
    %1029 = vmatprep.subr.mxu0 0.0
    %1030 = vmatpush2.msra.mxu0 0.0
    %1031 = vmatprep.subr.mxu0 0.0
    %1032 = vmatpush2.msra.mxu0 0.0
    %1033 = vmatprep.subr.mxu0 0.0
    %1034 = vmatpush2.msra.mxu0 0.0
    %1035 = vmatprep.subr.mxu0 0.0
    %1036 = vmatpush2.msra.mxu0 0.0
    %1037 = vmatprep.subr.mxu0 0.0
    %1038 = vmatpush2.msra.mxu0 0.0
    %1039 = vmatprep.subr.mxu0 0.0
    %1040 = vmatpush2.msra.mxu0 0.0
    %1041 = vmatprep.subr.mxu0 0.0
    %1042 = vmatpush2.msra.mxu0 0.0
    %1043 = vmatprep.subr.mxu0 0.0
    %1044 = vmatpush2.msra.mxu0 0.0
    %1045 = vmatprep.subr.mxu0 0.0
    %1046 = vmatpush2.msra.mxu0 0.0
    %1047 = vmatprep.subr.mxu0 0.0
    %1048 = vmatpush2.msra.mxu0 0.0
    %1049 = vmatprep.subr.mxu0 0.0
    %1050 = vmatpush2.msra.mxu0 0.0
    %1051 = vmatprep.mubr.f32.mxu0 0.0
    %1052 = vmatmul.mubr.f32.gmra.mxu0 %v982
    %v1053 = vpop.f32.mrf.mxu0
    %v1054 = vadd.f32 0.0, %v1053
    %v1055 = vpop.f32.mrf.mxu0
    %1056 = vmatprep.mubr.f32.mxu0 0.0
    %1057 = vmatmul.mubr.f32.gmra.mxu0 %v985
    %v1058 = vpop.f32.mrf.mxu0
    %v1059 = vadd.f32 0.0, %v1058
    %v1060 = vpop.f32.mrf.mxu0
    %1061 = vdwg.mxu0
    %v1063 = vsel %vm30, %v842, 0
    %v1066 = vsel %vm30, %v843, 0
    %1068 = vmatprep.subr.mxu0 0.0
    %1069 = vmatpush1.msra.mxu0 0.0
    %1070 = vmatprep.subr.mxu0 0.0
    %1071 = vmatpush1.msra.mxu0 0.0
    %1072 = vmatprep.subr.mxu0 0.0
    %1073 = vmatpush1.msra.mxu0 0.0
    %1074 = vmatprep.subr.mxu0 0.0
    %1075 = vmatpush1.msra.mxu0 0.0
    %1076 = vmatprep.subr.mxu0 0.0
    %1077 = vmatpush1.msra.mxu0 0.0
    %1078 = vmatprep.subr.mxu0 0.0
    %1079 = vmatpush1.msra.mxu0 0.0
    %1080 = vmatprep.subr.mxu0 0.0
    %1081 = vmatpush1.msra.mxu0 0.0
    %1082 = vmatprep.subr.mxu0 0.0
    %1083 = vmatpush1.msra.mxu0 0.0
    %1084 = vmatprep.subr.mxu0 0.0
    %1085 = vmatpush1.msra.mxu0 0.0
    %1086 = vmatprep.subr.mxu0 0.0
    %1087 = vmatpush1.msra.mxu0 0.0
    %1088 = vmatprep.subr.mxu0 0.0
    %1089 = vmatpush1.msra.mxu0 0.0
    %1090 = vmatprep.subr.mxu0 0.0
    %1091 = vmatpush1.msra.mxu0 0.0
    %1092 = vmatprep.subr.mxu0 0.0
    %1093 = vmatpush1.msra.mxu0 0.0
    %1094 = vmatprep.subr.mxu0 0.0
    %1095 = vmatpush1.msra.mxu0 0.0
    %1096 = vmatprep.subr.mxu0 0.0
    %1097 = vmatpush1.msra.mxu0 %v845
    %1098 = vmatprep.subr.mxu0 0.0
    %1099 = vmatpush1.msra.mxu0 %v844
    %1100 = vmatprep.subr.mxu0 0.0
    %1101 = vmatpush2.msra.mxu0 0.0
    %1102 = vmatprep.subr.mxu0 0.0
    %1103 = vmatpush2.msra.mxu0 0.0
    %1104 = vmatprep.subr.mxu0 0.0
    %1105 = vmatpush2.msra.mxu0 0.0
    %1106 = vmatprep.subr.mxu0 0.0
    %1107 = vmatpush2.msra.mxu0 0.0
    %1108 = vmatprep.subr.mxu0 0.0
    %1109 = vmatpush2.msra.mxu0 0.0
    %1110 = vmatprep.subr.mxu0 0.0
    %1111 = vmatpush2.msra.mxu0 0.0
    %1112 = vmatprep.subr.mxu0 0.0
    %1113 = vmatpush2.msra.mxu0 0.0
    %1114 = vmatprep.subr.mxu0 0.0
    %1115 = vmatpush2.msra.mxu0 0.0
    %1116 = vmatprep.subr.mxu0 0.0
    %1117 = vmatpush2.msra.mxu0 0.0
    %1118 = vmatprep.subr.mxu0 0.0
    %1119 = vmatpush2.msra.mxu0 0.0
    %1120 = vmatprep.subr.mxu0 0.0
    %1121 = vmatpush2.msra.mxu0 0.0
    %1122 = vmatprep.subr.mxu0 0.0
    %1123 = vmatpush2.msra.mxu0 0.0
    %1124 = vmatprep.subr.mxu0 0.0
    %1125 = vmatpush2.msra.mxu0 0.0
    %1126 = vmatprep.subr.mxu0 0.0
    %1127 = vmatpush2.msra.mxu0 0.0
    %1128 = vmatprep.subr.mxu0 0.0
    %1129 = vmatpush2.msra.mxu0 0.0
    %1130 = vmatprep.subr.mxu0 0.0
    %1131 = vmatpush2.msra.mxu0 0.0
    %1132 = vmatprep.mubr.f32.mxu0 0.0
    %1133 = vmatmul.mubr.f32.gmra.mxu0 %v1063
    %v1134 = vpop.f32.mrf.mxu0
    %v1135 = vadd.f32 %v1054, %v1134
    %v1136 = vpop.f32.mrf.mxu0
    %1137 = vmatprep.mubr.f32.mxu0 0.0
    %1138 = vmatmul.mubr.f32.gmra.mxu0 %v1066
    %v1139 = vpop.f32.mrf.mxu0
    %v1140 = vadd.f32 %v1059, %v1139
    %v1141 = vpop.f32.mrf.mxu0
    %1142 = vdwg.mxu0
    %1143 = vmatprep.subr.mxu0 0.0
    %1144 = vmatpush1.msra.mxu0 0.0
    %1145 = vmatprep.subr.mxu0 0.0
    %1146 = vmatpush1.msra.mxu0 0.0
    %1147 = vmatprep.subr.mxu0 0.0
    %1148 = vmatpush1.msra.mxu0 0.0
    %1149 = vmatprep.subr.mxu0 0.0
    %1150 = vmatpush1.msra.mxu0 0.0
    %1151 = vmatprep.subr.mxu0 0.0
    %1152 = vmatpush1.msra.mxu0 0.0
    %1153 = vmatprep.subr.mxu0 0.0
    %1154 = vmatpush1.msra.mxu0 0.0
    %1155 = vmatprep.subr.mxu0 0.0
    %1156 = vmatpush1.msra.mxu0 0.0
    %1157 = vmatprep.subr.mxu0 0.0
    %1158 = vmatpush1.msra.mxu0 0.0
    %1159 = vmatprep.subr.mxu0 0.0
    %1160 = vmatpush1.msra.mxu0 0.0
    %1161 = vmatprep.subr.mxu0 0.0
    %1162 = vmatpush1.msra.mxu0 0.0
    %1163 = vmatprep.subr.mxu0 0.0
    %1164 = vmatpush1.msra.mxu0 0.0
    %1165 = vmatprep.subr.mxu0 0.0
    %1166 = vmatpush1.msra.mxu0 0.0
    %1167 = vmatprep.subr.mxu0 0.0
    %1168 = vmatpush1.msra.mxu0 0.0
    %1169 = vmatprep.subr.mxu0 0.0
    %1170 = vmatpush1.msra.mxu0 0.0
    %1171 = vmatprep.subr.mxu0 0.0
    %1172 = vmatpush1.msra.mxu0 %v1140
    %1173 = vmatprep.subr.mxu0 0.0
    %1174 = vmatpush1.msra.mxu0 %v1135
    %1175 = vmatprep.subr.mxu0 0.0
    %1176 = vmatpush2.msra.mxu0 0.0
    %1177 = vmatprep.subr.mxu0 0.0
    %1178 = vmatpush2.msra.mxu0 0.0
    %1179 = vmatprep.subr.mxu0 0.0
    %1180 = vmatpush2.msra.mxu0 0.0
    %1181 = vmatprep.subr.mxu0 0.0
    %1182 = vmatpush2.msra.mxu0 0.0
    %1183 = vmatprep.subr.mxu0 0.0
    %1184 = vmatpush2.msra.mxu0 0.0
    %1185 = vmatprep.subr.mxu0 0.0
    %1186 = vmatpush2.msra.mxu0 0.0
    %1187 = vmatprep.subr.mxu0 0.0
    %1188 = vmatpush2.msra.mxu0 0.0
    %1189 = vmatprep.subr.mxu0 0.0
    %1190 = vmatpush2.msra.mxu0 0.0
    %1191 = vmatprep.subr.mxu0 0.0
    %1192 = vmatpush2.msra.mxu0 0.0
    %1193 = vmatprep.subr.mxu0 0.0
    %1194 = vmatpush2.msra.mxu0 0.0
    %1195 = vmatprep.subr.mxu0 0.0
    %1196 = vmatpush2.msra.mxu0 0.0
    %1197 = vmatprep.subr.mxu0 0.0
    %1198 = vmatpush2.msra.mxu0 0.0
    %1199 = vmatprep.subr.mxu0 0.0
    %1200 = vmatpush2.msra.mxu0 0.0
    %1201 = vmatprep.subr.mxu0 0.0
    %1202 = vmatpush2.msra.mxu0 0.0
    %1203 = vmatprep.subr.mxu0 0.0
    %1204 = vmatpush2.msra.mxu0 0.0
    %1205 = vmatprep.subr.mxu0 0.0
    %1206 = vmatpush2.msra.mxu0 0.0
    %1207 = vmatprep.mubr.f32.mxu0 0.0
    %1208 = vmatmul.mubr.f32.gmra.mxu0 %v550
    %v1209 = vpop.f32.mrf.mxu0
    %v1210 = vadd.f32 0.0, %v1209
    %v1211 = vpop.f32.mrf.mxu0
    %1212 = vmatprep.mubr.f32.mxu0 0.0
    %1213 = vmatmul.mubr.f32.gmra.mxu0 %v553
    %v1214 = vpop.f32.mrf.mxu0
    %v1215 = vadd.f32 0.0, %v1214
    %v1216 = vpop.f32.mrf.mxu0
    %1217 = vdwg.mxu0
    %v1218 = vmul.f32 %v1210, 0.5
    %v1219 = vmul.f32 %v1215, 0.5
    %v1220 = vld [vmem:[%s4] sm:$0xff]
    %v1221 = vld [vmem:[%s4 + $0x8] sm:$0xff]
    %v1222 = vld [vmem:[%s4 + $0x10] sm:$0xff]
    %v1223 = vld [vmem:[%s4 + $0x18] sm:$0xff]
    %v1224 = vld [vmem:[%s4 + $0x20] sm:$0xff]
    %v1225 = vld [vmem:[%s4 + $0x28] sm:$0xff]
    %v1226 = vld [vmem:[%s4 + $0x30] sm:$0xff]
    %v1227 = vld [vmem:[%s4 + $0x38] sm:$0xff]
    %v1229 = vsel %vm120, %v1218, 0
    %v1232 = vsel %vm120, %v1219, 0
    %1234 = vmatprep.subr.mxu0 0.0
    %1235 = vmatpush1.msra.mxu0 0.0
    %1236 = vmatprep.subr.mxu0 0.0
    %1237 = vmatpush1.msra.mxu0 0.0
    %1238 = vmatprep.subr.mxu0 0.0
    %1239 = vmatpush1.msra.mxu0 0.0
    %1240 = vmatprep.subr.mxu0 0.0
    %1241 = vmatpush1.msra.mxu0 0.0
    %1242 = vmatprep.subr.mxu0 0.0
    %1243 = vmatpush1.msra.mxu0 0.0
    %1244 = vmatprep.subr.mxu0 0.0
    %1245 = vmatpush1.msra.mxu0 0.0
    %1246 = vmatprep.subr.mxu0 0.0
    %1247 = vmatpush1.msra.mxu0 0.0
    %1248 = vmatprep.subr.mxu0 0.0
    %1249 = vmatpush1.msra.mxu0 0.0
    %1250 = vmatprep.subr.mxu0 0.0
    %1251 = vmatpush1.msra.mxu0 0.0
    %1252 = vmatprep.subr.mxu0 0.0
    %1253 = vmatpush1.msra.mxu0 0.0
    %1254 = vmatprep.subr.mxu0 0.0
    %1255 = vmatpush1.msra.mxu0 0.0
    %1256 = vmatprep.subr.mxu0 0.0
    %1257 = vmatpush1.msra.mxu0 0.0
    %1258 = vmatprep.subr.mxu0 %v1227
    %1259 = vmatpush1.msra.mxu0 %v1226
    %1260 = vmatprep.subr.mxu0 %v1225
    %1261 = vmatpush1.msra.mxu0 %v1224
    %1262 = vmatprep.subr.mxu0 %v1223
    %1263 = vmatpush1.msra.mxu0 %v1222
    %1264 = vmatprep.subr.mxu0 %v1221
    %1265 = vmatpush1.msra.mxu0 %v1220
    %1266 = vmatprep.subr.mxu0 0.0
    %1267 = vmatpush2.msra.mxu0 0.0
    %1268 = vmatprep.subr.mxu0 0.0
    %1269 = vmatpush2.msra.mxu0 0.0
    %1270 = vmatprep.subr.mxu0 0.0
    %1271 = vmatpush2.msra.mxu0 0.0
    %1272 = vmatprep.subr.mxu0 0.0
    %1273 = vmatpush2.msra.mxu0 0.0
    %1274 = vmatprep.subr.mxu0 0.0
    %1275 = vmatpush2.msra.mxu0 0.0
    %1276 = vmatprep.subr.mxu0 0.0
    %1277 = vmatpush2.msra.mxu0 0.0
    %1278 = vmatprep.subr.mxu0 0.0
    %1279 = vmatpush2.msra.mxu0 0.0
    %1280 = vmatprep.subr.mxu0 0.0
    %1281 = vmatpush2.msra.mxu0 0.0
    %1282 = vmatprep.subr.mxu0 0.0
    %1283 = vmatpush2.msra.mxu0 0.0
    %1284 = vmatprep.subr.mxu0 0.0
    %1285 = vmatpush2.msra.mxu0 0.0
    %1286 = vmatprep.subr.mxu0 0.0
    %1287 = vmatpush2.msra.mxu0 0.0
    %1288 = vmatprep.subr.mxu0 0.0
    %1289 = vmatpush2.msra.mxu0 0.0
    %1290 = vmatprep.subr.mxu0 0.0
    %1291 = vmatpush2.msra.mxu0 0.0
    %1292 = vmatprep.subr.mxu0 0.0
    %1293 = vmatpush2.msra.mxu0 0.0
    %1294 = vmatprep.subr.mxu0 0.0
    %1295 = vmatpush2.msra.mxu0 0.0
    %1296 = vmatprep.subr.mxu0 0.0
    %1297 = vmatpush2.msra.mxu0 0.0
    %1298 = vmatprep.mubr.f32.mxu0 0.0
    %1299 = vmatmul.mubr.f32.gmra.mxu0 %v1229
    %v1300 = vpop.f32.mrf.mxu0
    %v1301 = vadd.f32 0.0, %v1300
    %v1302 = vpop.f32.mrf.mxu0
    %v1303 = vadd.f32 0.0, %v1302
    %1304 = vmatprep.mubr.f32.mxu0 0.0
    %1305 = vmatmul.mubr.f32.gmra.mxu0 %v1232
    %v1306 = vpop.f32.mrf.mxu0
    %v1307 = vadd.f32 0.0, %v1306
    %v1308 = vpop.f32.mrf.mxu0
    %v1309 = vadd.f32 0.0, %v1308
    %1310 = vdwg.mxu0
    %v1311 = vtanh.pop %v1301
    %v1312 = vtanh.pop %v1303
    %v1313 = vtanh.pop %v1307
    %v1314 = vtanh.pop %v1309
    %vm1315 = vcmask 523264
    %v1317 = vsel %vm1315, %v1312, 0
    %v1320 = vsel %vm1315, %v1314, 0
    %v1323 = vsel %vm1315, %v1311, 0
    %v1326 = vsel %vm1315, %v1313, 0
    %1328 = vmatprep.subr.mxu0 0.0
    %1329 = vmatpush1.xpose.msra.mxu0 0.0
    %1330 = vmatprep.subr.mxu0 0.0
    %1331 = vmatpush1.xpose.msra.mxu0 0.0
    %1332 = vmatprep.subr.mxu0 0.0
    %1333 = vmatpush1.xpose.msra.mxu0 0.0
    %1334 = vmatprep.subr.mxu0 0.0
    %1335 = vmatpush1.xpose.msra.mxu0 0.0
    %1336 = vmatprep.subr.mxu0 0.0
    %1337 = vmatpush1.xpose.msra.mxu0 0.0
    %1338 = vmatprep.subr.mxu0 0.0
    %1339 = vmatpush1.xpose.msra.mxu0 0.0
    %1340 = vmatprep.subr.mxu0 0.0
    %1341 = vmatpush1.xpose.msra.mxu0 0.0
    %1342 = vmatprep.subr.mxu0 0.0
    %1343 = vmatpush1.xpose.msra.mxu0 0.0
    %1344 = vmatprep.subr.mxu0 0.0
    %1345 = vmatpush1.xpose.msra.mxu0 0.0
    %1346 = vmatprep.subr.mxu0 0.0
    %1347 = vmatpush1.xpose.msra.mxu0 0.0
    %1348 = vmatprep.subr.mxu0 0.0
    %1349 = vmatpush1.xpose.msra.mxu0 0.0
    %1350 = vmatprep.subr.mxu0 0.0
    %1351 = vmatpush1.xpose.msra.mxu0 0.0
    %1352 = vmatprep.subr.mxu0 0.0
    %1353 = vmatpush1.xpose.msra.mxu0 0.0
    %1354 = vmatprep.subr.mxu0 0.0
    %1355 = vmatpush1.xpose.msra.mxu0 0.0
    %1356 = vmatprep.subr.mxu0 0.0
    %1357 = vmatpush1.xpose.msra.mxu0 %v1326
    %1358 = vmatprep.subr.mxu0 0.0
    %1359 = vmatpush1.xpose.msra.mxu0 %v1323
    %1360 = vmatprep.subr.mxu0 0.0
    %1361 = vmatpush2.xpose.msra.mxu0 0.0
    %1362 = vmatprep.subr.mxu0 0.0
    %1363 = vmatpush2.xpose.msra.mxu0 0.0
    %1364 = vmatprep.subr.mxu0 0.0
    %1365 = vmatpush2.xpose.msra.mxu0 0.0
    %1366 = vmatprep.subr.mxu0 0.0
    %1367 = vmatpush2.xpose.msra.mxu0 0.0
    %1368 = vmatprep.subr.mxu0 0.0
    %1369 = vmatpush2.xpose.msra.mxu0 0.0
    %1370 = vmatprep.subr.mxu0 0.0
    %1371 = vmatpush2.xpose.msra.mxu0 0.0
    %1372 = vmatprep.subr.mxu0 0.0
    %1373 = vmatpush2.xpose.msra.mxu0 0.0
    %1374 = vmatprep.subr.mxu0 0.0
    %1375 = vmatpush2.xpose.msra.mxu0 0.0
    %1376 = vmatprep.subr.mxu0 0.0
    %1377 = vmatpush2.xpose.msra.mxu0 0.0
    %1378 = vmatprep.subr.mxu0 0.0
    %1379 = vmatpush2.xpose.msra.mxu0 0.0
    %1380 = vmatprep.subr.mxu0 0.0
    %1381 = vmatpush2.xpose.msra.mxu0 0.0
    %1382 = vmatprep.subr.mxu0 0.0
    %1383 = vmatpush2.xpose.msra.mxu0 0.0
    %1384 = vmatprep.subr.mxu0 0.0
    %1385 = vmatpush2.xpose.msra.mxu0 0.0
    %1386 = vmatprep.subr.mxu0 0.0
    %1387 = vmatpush2.xpose.msra.mxu0 0.0
    %1388 = vmatprep.subr.mxu0 0.0
    %1389 = vmatpush2.xpose.msra.mxu0 0.0
    %1390 = vmatprep.subr.mxu0 0.0
    %1391 = vmatpush2.xpose.msra.mxu0 0.0
    %1392 = vmatprep.mubr.f32.mxu0 0.0
    %1393 = vmatmul.mubr.f32.gmra.mxu0 %v1317
    %v1394 = vpop.f32.mrf.mxu0
    %v1395 = vadd.f32 0.0, %v1394
    %v1396 = vpop.f32.mrf.mxu0
    %1397 = vmatprep.mubr.f32.mxu0 0.0
    %1398 = vmatmul.mubr.f32.gmra.mxu0 %v1320
    %v1399 = vpop.f32.mrf.mxu0
    %v1400 = vadd.f32 0.0, %v1399
    %v1401 = vpop.f32.mrf.mxu0
    %1402 = vdwg.mxu0
    %v1403 = vmul.f32 %v1395, 0.125
    %v1404 = vmul.f32 %v1400, 0.125
    %v1405 = vmul.f32 %v1403, 1.442695
    %v1406 = vpow.pop %v1405
    %v1407 = vmul.f32 %v1404, 1.442695
    %v1408 = vpow.pop %v1407
    %v1409 = vmul.f32 %v1406, %v24
    %v1410 = vmul.f32 %v1408, %v25
    %v1411 = vsel %vm30, %v1409, 0.0
    %1412 = vadd.xlane.f32.xlu0 %v1411
    %v1413 = vpop.xlane.xlu0 %1412
    %v1414 = vsel %vm30, %v1410, 0.0
    %1415 = vadd.xlane.f32.xlu0 %v1414
    %v1416 = vpop.xlane.xlu0 %1415
    %v1417 = vrcp.pop %v1413
    %v1418 = vrcp.pop %v1416
    %v1421 = vlaneseq
    %v1422 = vshrl.u32 %v1421, 7
    %v1423 = vsub.s32 %v223, %v1422
    %v1424 = vrot.slane %v1417, %v1423
    %v1425 = vlaneseq
    %v1426 = vshrl.u32 %v1425, 7
    %v1427 = vsub.s32 %v228, %v1426
    %v1428 = vrot.slane %v1418, %v1427
    %v1429 = vsel %vm233, %v1428, %v1424
    %v1430 = vsel %vm235, %v1429, %v1429
    %v1431 = vsel %vm237, %v1429, %v1430
    %v1432 = vsel %vm239, %v1429, %v1431
    %v1433 = vsel %vm241, %v1429, %v1432
    %v1434 = vsel %vm243, %v1429, %v1433
    %v1435 = vsel %vm245, %v1429, %v1434
    %v1437 = vmul.f32 %v1409, %v1435
    %v1438 = vmul.f32 %v1410, %v1435
    %v1439 = vtanh.pop %v1311
    %v1440 = vtanh.pop %v1313
    %1441 = vrot.lane.b32.xlu0 %v1312, 64
    %v1442 = vpop.permute.xlu0 %1441
    %1443 = vrot.lane.b32.xlu0 %v1314, 64
    %v1444 = vpop.permute.xlu0 %1443
    %1445 = vrot.lane.b32.xlu0 %v1311, 64
    %v1446 = vpop.permute.xlu0 %1445
    %1447 = vrot.lane.b32.xlu0 %v1313, 64
    %v1448 = vpop.permute.xlu0 %1447
    %v1449 = vsel %vm1315, %v1442, 0
    %v1451 = vsel %vm1315, %v1444, 0
    %v1453 = vsel %vm1315, %v1446, 0
    %v1455 = vsel %vm1315, %v1448, 0
    %1457 = vmatprep.subr.mxu0 0.0
    %1458 = vmatpush1.xpose.msra.mxu0 0.0
    %1459 = vmatprep.subr.mxu0 0.0
    %1460 = vmatpush1.xpose.msra.mxu0 0.0
    %1461 = vmatprep.subr.mxu0 0.0
    %1462 = vmatpush1.xpose.msra.mxu0 0.0
    %1463 = vmatprep.subr.mxu0 0.0
    %1464 = vmatpush1.xpose.msra.mxu0 0.0
    %1465 = vmatprep.subr.mxu0 0.0
    %1466 = vmatpush1.xpose.msra.mxu0 0.0
    %1467 = vmatprep.subr.mxu0 0.0
    %1468 = vmatpush1.xpose.msra.mxu0 0.0
    %1469 = vmatprep.subr.mxu0 0.0
    %1470 = vmatpush1.xpose.msra.mxu0 0.0
    %1471 = vmatprep.subr.mxu0 0.0
    %1472 = vmatpush1.xpose.msra.mxu0 0.0
    %1473 = vmatprep.subr.mxu0 0.0
    %1474 = vmatpush1.xpose.msra.mxu0 0.0
    %1475 = vmatprep.subr.mxu0 0.0
    %1476 = vmatpush1.xpose.msra.mxu0 0.0
    %1477 = vmatprep.subr.mxu0 0.0
    %1478 = vmatpush1.xpose.msra.mxu0 0.0
    %1479 = vmatprep.subr.mxu0 0.0
    %1480 = vmatpush1.xpose.msra.mxu0 0.0
    %1481 = vmatprep.subr.mxu0 0.0
    %1482 = vmatpush1.xpose.msra.mxu0 0.0
    %1483 = vmatprep.subr.mxu0 0.0
    %1484 = vmatpush1.xpose.msra.mxu0 0.0
    %1485 = vmatprep.subr.mxu0 0.0
    %1486 = vmatpush1.xpose.msra.mxu0 %v1455
    %1487 = vmatprep.subr.mxu0 0.0
    %1488 = vmatpush1.xpose.msra.mxu0 %v1453
    %1489 = vmatprep.subr.mxu0 0.0
    %1490 = vmatpush2.xpose.msra.mxu0 0.0
    %1491 = vmatprep.subr.mxu0 0.0
    %1492 = vmatpush2.xpose.msra.mxu0 0.0
    %1493 = vmatprep.subr.mxu0 0.0
    %1494 = vmatpush2.xpose.msra.mxu0 0.0
    %1495 = vmatprep.subr.mxu0 0.0
    %1496 = vmatpush2.xpose.msra.mxu0 0.0
    %1497 = vmatprep.subr.mxu0 0.0
    %1498 = vmatpush2.xpose.msra.mxu0 0.0
    %1499 = vmatprep.subr.mxu0 0.0
    %1500 = vmatpush2.xpose.msra.mxu0 0.0
    %1501 = vmatprep.subr.mxu0 0.0
    %1502 = vmatpush2.xpose.msra.mxu0 0.0
    %1503 = vmatprep.subr.mxu0 0.0
    %1504 = vmatpush2.xpose.msra.mxu0 0.0
    %1505 = vmatprep.subr.mxu0 0.0
    %1506 = vmatpush2.xpose.msra.mxu0 0.0
    %1507 = vmatprep.subr.mxu0 0.0
    %1508 = vmatpush2.xpose.msra.mxu0 0.0
    %1509 = vmatprep.subr.mxu0 0.0
    %1510 = vmatpush2.xpose.msra.mxu0 0.0
    %1511 = vmatprep.subr.mxu0 0.0
    %1512 = vmatpush2.xpose.msra.mxu0 0.0
    %1513 = vmatprep.subr.mxu0 0.0
    %1514 = vmatpush2.xpose.msra.mxu0 0.0
    %1515 = vmatprep.subr.mxu0 0.0
    %1516 = vmatpush2.xpose.msra.mxu0 0.0
    %1517 = vmatprep.subr.mxu0 0.0
    %1518 = vmatpush2.xpose.msra.mxu0 0.0
    %1519 = vmatprep.subr.mxu0 0.0
    %1520 = vmatpush2.xpose.msra.mxu0 0.0
    %1521 = vmatprep.mubr.f32.mxu0 0.0
    %1522 = vmatmul.mubr.f32.gmra.mxu0 %v1449
    %v1523 = vpop.f32.mrf.mxu0
    %v1524 = vadd.f32 0.0, %v1523
    %v1525 = vpop.f32.mrf.mxu0
    %1526 = vmatprep.mubr.f32.mxu0 0.0
    %1527 = vmatmul.mubr.f32.gmra.mxu0 %v1451
    %v1528 = vpop.f32.mrf.mxu0
    %v1529 = vadd.f32 0.0, %v1528
    %v1530 = vpop.f32.mrf.mxu0
    %1531 = vdwg.mxu0
    %v1532 = vmul.f32 %v1524, 0.125
    %v1533 = vmul.f32 %v1529, 0.125
    %v1534 = vmul.f32 %v1532, 1.442695
    %v1535 = vpow.pop %v1534
    %v1536 = vmul.f32 %v1533, 1.442695
    %v1537 = vpow.pop %v1536
    %v1538 = vmul.f32 %v1535, %v24
    %v1539 = vmul.f32 %v1537, %v25
    %v1540 = vsel %vm30, %v1538, 0.0
    %1541 = vadd.xlane.f32.xlu0 %v1540
    %v1542 = vpop.xlane.xlu0 %1541
    %v1543 = vsel %vm30, %v1539, 0.0
    %1544 = vadd.xlane.f32.xlu0 %v1543
    %v1545 = vpop.xlane.xlu0 %1544
    %v1546 = vrcp.pop %v1542
    %v1547 = vrcp.pop %v1545
    %v1550 = vlaneseq
    %v1551 = vshrl.u32 %v1550, 7
    %v1552 = vsub.s32 %v223, %v1551
    %v1553 = vrot.slane %v1546, %v1552
    %v1554 = vlaneseq
    %v1555 = vshrl.u32 %v1554, 7
    %v1556 = vsub.s32 %v228, %v1555
    %v1557 = vrot.slane %v1547, %v1556
    %v1558 = vsel %vm233, %v1557, %v1553
    %v1559 = vsel %vm235, %v1558, %v1558
    %v1560 = vsel %vm237, %v1558, %v1559
    %v1561 = vsel %vm239, %v1558, %v1560
    %v1562 = vsel %vm241, %v1558, %v1561
    %v1563 = vsel %vm243, %v1558, %v1562
    %v1564 = vsel %vm245, %v1558, %v1563
    %v1566 = vmul.f32 %v1538, %v1564
    %v1567 = vmul.f32 %v1539, %v1564
    %1570 = vrot.lane.b32.xlu0 %v1439, 64
    %v1571 = vpop.permute.xlu0 %1570
    %1572 = vrot.lane.b32.xlu0 %v1440, 64
    %v1573 = vpop.permute.xlu0 %1572
    %v1577 = vsel %vm30, %v1566, 0
    %v1580 = vsel %vm30, %v1567, 0
    %1582 = vmatprep.subr.mxu0 0.0
    %1583 = vmatpush1.msra.mxu0 0.0
    %1584 = vmatprep.subr.mxu0 0.0
    %1585 = vmatpush1.msra.mxu0 0.0
    %1586 = vmatprep.subr.mxu0 0.0
    %1587 = vmatpush1.msra.mxu0 0.0
    %1588 = vmatprep.subr.mxu0 0.0
    %1589 = vmatpush1.msra.mxu0 0.0
    %1590 = vmatprep.subr.mxu0 0.0
    %1591 = vmatpush1.msra.mxu0 0.0
    %1592 = vmatprep.subr.mxu0 0.0
    %1593 = vmatpush1.msra.mxu0 0.0
    %1594 = vmatprep.subr.mxu0 0.0
    %1595 = vmatpush1.msra.mxu0 0.0
    %1596 = vmatprep.subr.mxu0 0.0
    %1597 = vmatpush1.msra.mxu0 0.0
    %1598 = vmatprep.subr.mxu0 0.0
    %1599 = vmatpush1.msra.mxu0 0.0
    %1600 = vmatprep.subr.mxu0 0.0
    %1601 = vmatpush1.msra.mxu0 0.0
    %1602 = vmatprep.subr.mxu0 0.0
    %1603 = vmatpush1.msra.mxu0 0.0
    %1604 = vmatprep.subr.mxu0 0.0
    %1605 = vmatpush1.msra.mxu0 0.0
    %1606 = vmatprep.subr.mxu0 0.0
    %1607 = vmatpush1.msra.mxu0 0.0
    %1608 = vmatprep.subr.mxu0 0.0
    %1609 = vmatpush1.msra.mxu0 0.0
    %1610 = vmatprep.subr.mxu0 0.0
    %1611 = vmatpush1.msra.mxu0 %v1573
    %1612 = vmatprep.subr.mxu0 0.0
    %1613 = vmatpush1.msra.mxu0 %v1571
    %1614 = vmatprep.subr.mxu0 0.0
    %1615 = vmatpush2.msra.mxu0 0.0
    %1616 = vmatprep.subr.mxu0 0.0
    %1617 = vmatpush2.msra.mxu0 0.0
    %1618 = vmatprep.subr.mxu0 0.0
    %1619 = vmatpush2.msra.mxu0 0.0
    %1620 = vmatprep.subr.mxu0 0.0
    %1621 = vmatpush2.msra.mxu0 0.0
    %1622 = vmatprep.subr.mxu0 0.0
    %1623 = vmatpush2.msra.mxu0 0.0
    %1624 = vmatprep.subr.mxu0 0.0
    %1625 = vmatpush2.msra.mxu0 0.0
    %1626 = vmatprep.subr.mxu0 0.0
    %1627 = vmatpush2.msra.mxu0 0.0
    %1628 = vmatprep.subr.mxu0 0.0
    %1629 = vmatpush2.msra.mxu0 0.0
    %1630 = vmatprep.subr.mxu0 0.0
    %1631 = vmatpush2.msra.mxu0 0.0
    %1632 = vmatprep.subr.mxu0 0.0
    %1633 = vmatpush2.msra.mxu0 0.0
    %1634 = vmatprep.subr.mxu0 0.0
    %1635 = vmatpush2.msra.mxu0 0.0
    %1636 = vmatprep.subr.mxu0 0.0
    %1637 = vmatpush2.msra.mxu0 0.0
    %1638 = vmatprep.subr.mxu0 0.0
    %1639 = vmatpush2.msra.mxu0 0.0
    %1640 = vmatprep.subr.mxu0 0.0
    %1641 = vmatpush2.msra.mxu0 0.0
    %1642 = vmatprep.subr.mxu0 0.0
    %1643 = vmatpush2.msra.mxu0 0.0
    %1644 = vmatprep.subr.mxu0 0.0
    %1645 = vmatpush2.msra.mxu0 0.0
    %1646 = vmatprep.mubr.f32.mxu0 0.0
    %1647 = vmatmul.mubr.f32.gmra.mxu0 %v1577
    %v1648 = vpop.f32.mrf.mxu0
    %v1649 = vadd.f32 0.0, %v1648
    %v1650 = vpop.f32.mrf.mxu0
    %1651 = vmatprep.mubr.f32.mxu0 0.0
    %1652 = vmatmul.mubr.f32.gmra.mxu0 %v1580
    %v1653 = vpop.f32.mrf.mxu0
    %v1654 = vadd.f32 0.0, %v1653
    %v1655 = vpop.f32.mrf.mxu0
    %1656 = vdwg.mxu0
    %v1658 = vsel %vm30, %v1437, 0
    %v1661 = vsel %vm30, %v1438, 0
    %1663 = vmatprep.subr.mxu0 0.0
    %1664 = vmatpush1.msra.mxu0 0.0
    %1665 = vmatprep.subr.mxu0 0.0
    %1666 = vmatpush1.msra.mxu0 0.0
    %1667 = vmatprep.subr.mxu0 0.0
    %1668 = vmatpush1.msra.mxu0 0.0
    %1669 = vmatprep.subr.mxu0 0.0
    %1670 = vmatpush1.msra.mxu0 0.0
    %1671 = vmatprep.subr.mxu0 0.0
    %1672 = vmatpush1.msra.mxu0 0.0
    %1673 = vmatprep.subr.mxu0 0.0
    %1674 = vmatpush1.msra.mxu0 0.0
    %1675 = vmatprep.subr.mxu0 0.0
    %1676 = vmatpush1.msra.mxu0 0.0
    %1677 = vmatprep.subr.mxu0 0.0
    %1678 = vmatpush1.msra.mxu0 0.0
    %1679 = vmatprep.subr.mxu0 0.0
    %1680 = vmatpush1.msra.mxu0 0.0
    %1681 = vmatprep.subr.mxu0 0.0
    %1682 = vmatpush1.msra.mxu0 0.0
    %1683 = vmatprep.subr.mxu0 0.0
    %1684 = vmatpush1.msra.mxu0 0.0
    %1685 = vmatprep.subr.mxu0 0.0
    %1686 = vmatpush1.msra.mxu0 0.0
    %1687 = vmatprep.subr.mxu0 0.0
    %1688 = vmatpush1.msra.mxu0 0.0
    %1689 = vmatprep.subr.mxu0 0.0
    %1690 = vmatpush1.msra.mxu0 0.0
    %1691 = vmatprep.subr.mxu0 0.0
    %1692 = vmatpush1.msra.mxu0 %v1440
    %1693 = vmatprep.subr.mxu0 0.0
    %1694 = vmatpush1.msra.mxu0 %v1439
    %1695 = vmatprep.subr.mxu0 0.0
    %1696 = vmatpush2.msra.mxu0 0.0
    %1697 = vmatprep.subr.mxu0 0.0
    %1698 = vmatpush2.msra.mxu0 0.0
    %1699 = vmatprep.subr.mxu0 0.0
    %1700 = vmatpush2.msra.mxu0 0.0
    %1701 = vmatprep.subr.mxu0 0.0
    %1702 = vmatpush2.msra.mxu0 0.0
    %1703 = vmatprep.subr.mxu0 0.0
    %1704 = vmatpush2.msra.mxu0 0.0
    %1705 = vmatprep.subr.mxu0 0.0
    %1706 = vmatpush2.msra.mxu0 0.0
    %1707 = vmatprep.subr.mxu0 0.0
    %1708 = vmatpush2.msra.mxu0 0.0
    %1709 = vmatprep.subr.mxu0 0.0
    %1710 = vmatpush2.msra.mxu0 0.0
    %1711 = vmatprep.subr.mxu0 0.0
    %1712 = vmatpush2.msra.mxu0 0.0
    %1713 = vmatprep.subr.mxu0 0.0
    %1714 = vmatpush2.msra.mxu0 0.0
    %1715 = vmatprep.subr.mxu0 0.0
    %1716 = vmatpush2.msra.mxu0 0.0
    %1717 = vmatprep.subr.mxu0 0.0
    %1718 = vmatpush2.msra.mxu0 0.0
    %1719 = vmatprep.subr.mxu0 0.0
    %1720 = vmatpush2.msra.mxu0 0.0
    %1721 = vmatprep.subr.mxu0 0.0
    %1722 = vmatpush2.msra.mxu0 0.0
    %1723 = vmatprep.subr.mxu0 0.0
    %1724 = vmatpush2.msra.mxu0 0.0
    %1725 = vmatprep.subr.mxu0 0.0
    %1726 = vmatpush2.msra.mxu0 0.0
    %1727 = vmatprep.mubr.f32.mxu0 0.0
    %1728 = vmatmul.mubr.f32.gmra.mxu0 %v1658
    %v1729 = vpop.f32.mrf.mxu0
    %v1730 = vadd.f32 %v1649, %v1729
    %v1731 = vpop.f32.mrf.mxu0
    %1732 = vmatprep.mubr.f32.mxu0 0.0
    %1733 = vmatmul.mubr.f32.gmra.mxu0 %v1661
    %v1734 = vpop.f32.mrf.mxu0
    %v1735 = vadd.f32 %v1654, %v1734
    %v1736 = vpop.f32.mrf.mxu0
    %1737 = vdwg.mxu0
    %1738 = vmatprep.subr.mxu0 0.0
    %1739 = vmatpush1.msra.mxu0 0.0
    %1740 = vmatprep.subr.mxu0 0.0
    %1741 = vmatpush1.msra.mxu0 0.0
    %1742 = vmatprep.subr.mxu0 0.0
    %1743 = vmatpush1.msra.mxu0 0.0
    %1744 = vmatprep.subr.mxu0 0.0
    %1745 = vmatpush1.msra.mxu0 0.0
    %1746 = vmatprep.subr.mxu0 0.0
    %1747 = vmatpush1.msra.mxu0 0.0
    %1748 = vmatprep.subr.mxu0 0.0
    %1749 = vmatpush1.msra.mxu0 0.0
    %1750 = vmatprep.subr.mxu0 0.0
    %1751 = vmatpush1.msra.mxu0 0.0
    %1752 = vmatprep.subr.mxu0 0.0
    %1753 = vmatpush1.msra.mxu0 0.0
    %1754 = vmatprep.subr.mxu0 0.0
    %1755 = vmatpush1.msra.mxu0 0.0
    %1756 = vmatprep.subr.mxu0 0.0
    %1757 = vmatpush1.msra.mxu0 0.0
    %1758 = vmatprep.subr.mxu0 0.0
    %1759 = vmatpush1.msra.mxu0 0.0
    %1760 = vmatprep.subr.mxu0 0.0
    %1761 = vmatpush1.msra.mxu0 0.0
    %1762 = vmatprep.subr.mxu0 0.0
    %1763 = vmatpush1.msra.mxu0 0.0
    %1764 = vmatprep.subr.mxu0 0.0
    %1765 = vmatpush1.msra.mxu0 0.0
    %1766 = vmatprep.subr.mxu0 0.0
    %1767 = vmatpush1.msra.mxu0 %v1735
    %1768 = vmatprep.subr.mxu0 0.0
    %1769 = vmatpush1.msra.mxu0 %v1730
    %1770 = vmatprep.subr.mxu0 0.0
    %1771 = vmatpush2.msra.mxu0 0.0
    %1772 = vmatprep.subr.mxu0 0.0
    %1773 = vmatpush2.msra.mxu0 0.0
    %1774 = vmatprep.subr.mxu0 0.0
    %1775 = vmatpush2.msra.mxu0 0.0
    %1776 = vmatprep.subr.mxu0 0.0
    %1777 = vmatpush2.msra.mxu0 0.0
    %1778 = vmatprep.subr.mxu0 0.0
    %1779 = vmatpush2.msra.mxu0 0.0
    %1780 = vmatprep.subr.mxu0 0.0
    %1781 = vmatpush2.msra.mxu0 0.0
    %1782 = vmatprep.subr.mxu0 0.0
    %1783 = vmatpush2.msra.mxu0 0.0
    %1784 = vmatprep.subr.mxu0 0.0
    %1785 = vmatpush2.msra.mxu0 0.0
    %1786 = vmatprep.subr.mxu0 0.0
    %1787 = vmatpush2.msra.mxu0 0.0
    %1788 = vmatprep.subr.mxu0 0.0
    %1789 = vmatpush2.msra.mxu0 0.0
    %1790 = vmatprep.subr.mxu0 0.0
    %1791 = vmatpush2.msra.mxu0 0.0
    %1792 = vmatprep.subr.mxu0 0.0
    %1793 = vmatpush2.msra.mxu0 0.0
    %1794 = vmatprep.subr.mxu0 0.0
    %1795 = vmatpush2.msra.mxu0 0.0
    %1796 = vmatprep.subr.mxu0 0.0
    %1797 = vmatpush2.msra.mxu0 0.0
    %1798 = vmatprep.subr.mxu0 0.0
    %1799 = vmatpush2.msra.mxu0 0.0
    %1800 = vmatprep.subr.mxu0 0.0
    %1801 = vmatpush2.msra.mxu0 0.0
    %1802 = vmatprep.mubr.f32.mxu0 0.0
    %1803 = vmatmul.mubr.f32.gmra.mxu0 %v550
    %v1804 = vpop.f32.mrf.mxu0
    %v1805 = vadd.f32 0.0, %v1804
    %v1806 = vpop.f32.mrf.mxu0
    %1807 = vmatprep.mubr.f32.mxu0 0.0
    %1808 = vmatmul.mubr.f32.gmra.mxu0 %v553
    %v1809 = vpop.f32.mrf.mxu0
    %v1810 = vadd.f32 0.0, %v1809
    %v1811 = vpop.f32.mrf.mxu0
    %1812 = vdwg.mxu0
    %v1813 = vmul.f32 %v1805, 0.5
    %v1814 = vmul.f32 %v1810, 0.5
    %1815 = vst.msk [vmem:[#allocation2] sm:$0xff] %vm1315, %v1813
    %1816 = vst.msk [vmem:[#allocation2 + $0x8] sm:$0xff] %vm1315, %v1814
    %v1818 = vsel %vm1315, %v1813, 0
    %v1821 = vsel %vm1315, %v1814, 0
    %1823 = vmatprep.subr.mxu0 0.0
    %1824 = vmatpush1.xpose.msra.mxu0 0.0
    %1825 = vmatprep.subr.mxu0 0.0
    %1826 = vmatpush1.xpose.msra.mxu0 0.0
    %1827 = vmatprep.subr.mxu0 0.0
    %1828 = vmatpush1.xpose.msra.mxu0 0.0
    %1829 = vmatprep.subr.mxu0 0.0
    %1830 = vmatpush1.xpose.msra.mxu0 0.0
    %1831 = vmatprep.subr.mxu0 0.0
    %1832 = vmatpush1.xpose.msra.mxu0 0.0
    %1833 = vmatprep.subr.mxu0 0.0
    %1834 = vmatpush1.xpose.msra.mxu0 0.0
    %1835 = vmatprep.subr.mxu0 0.0
    %1836 = vmatpush1.xpose.msra.mxu0 0.0
    %1837 = vmatprep.subr.mxu0 0.0
    %1838 = vmatpush1.xpose.msra.mxu0 0.0
    %1839 = vmatprep.subr.mxu0 0.0
    %1840 = vmatpush1.xpose.msra.mxu0 0.0
    %1841 = vmatprep.subr.mxu0 0.0
    %1842 = vmatpush1.xpose.msra.mxu0 0.0
    %1843 = vmatprep.subr.mxu0 0.0
    %1844 = vmatpush1.xpose.msra.mxu0 0.0
    %1845 = vmatprep.subr.mxu0 0.0
    %1846 = vmatpush1.xpose.msra.mxu0 0.0
    %1847 = vmatprep.subr.mxu0 0.0
    %1848 = vmatpush1.xpose.msra.mxu0 0.0
    %1849 = vmatprep.subr.mxu0 0.0
    %1850 = vmatpush1.xpose.msra.mxu0 0.0
    %1851 = vmatprep.subr.mxu0 0.0
    %1852 = vmatpush1.xpose.msra.mxu0 %v1821
    %1853 = vmatprep.subr.mxu0 0.0
    %1854 = vmatpush1.xpose.msra.mxu0 %v1818
    %1855 = vmatprep.subr.mxu0 0.0
    %1856 = vmatpush2.xpose.msra.mxu0 0.0
    %1857 = vmatprep.subr.mxu0 0.0
    %1858 = vmatpush2.xpose.msra.mxu0 0.0
    %1859 = vmatprep.subr.mxu0 0.0
    %1860 = vmatpush2.xpose.msra.mxu0 0.0
    %1861 = vmatprep.subr.mxu0 0.0
    %1862 = vmatpush2.xpose.msra.mxu0 0.0
    %1863 = vmatprep.subr.mxu0 0.0
    %1864 = vmatpush2.xpose.msra.mxu0 0.0
    %1865 = vmatprep.subr.mxu0 0.0
    %1866 = vmatpush2.xpose.msra.mxu0 0.0
    %1867 = vmatprep.subr.mxu0 0.0
    %1868 = vmatpush2.xpose.msra.mxu0 0.0
    %1869 = vmatprep.subr.mxu0 0.0
    %1870 = vmatpush2.xpose.msra.mxu0 0.0
    %1871 = vmatprep.subr.mxu0 0.0
    %1872 = vmatpush2.xpose.msra.mxu0 0.0
    %1873 = vmatprep.subr.mxu0 0.0
    %1874 = vmatpush2.xpose.msra.mxu0 0.0
    %1875 = vmatprep.subr.mxu0 0.0
    %1876 = vmatpush2.xpose.msra.mxu0 0.0
    %1877 = vmatprep.subr.mxu0 0.0
    %1878 = vmatpush2.xpose.msra.mxu0 0.0
    %1879 = vmatprep.subr.mxu0 0.0
    %1880 = vmatpush2.xpose.msra.mxu0 0.0
    %1881 = vmatprep.subr.mxu0 0.0
    %1882 = vmatpush2.xpose.msra.mxu0 0.0
    %1883 = vmatprep.subr.mxu0 0.0
    %1884 = vmatpush2.xpose.msra.mxu0 0.0
    %1885 = vmatprep.subr.mxu0 0.0
    %1886 = vmatpush2.xpose.msra.mxu0 0.0
    %1887 = vmatprep.mubr.f32.mxu0 0.0
    %1888 = vmatmul.mubr.f32.gmra.mxu0 %v1818
    %v1889 = vpop.f32.mrf.mxu0
    %v1890 = vadd.f32 0.0, %v1889
    %v1891 = vpop.f32.mrf.mxu0
    %1892 = vmatprep.mubr.f32.mxu0 0.0
    %1893 = vmatmul.mubr.f32.gmra.mxu0 %v1821
    %v1894 = vpop.f32.mrf.mxu0
    %v1895 = vadd.f32 0.0, %v1894
    %v1896 = vpop.f32.mrf.mxu0
    %1897 = vdwg.mxu0
    %v1898 = vxor.u32 %v1890, 2147483648
    %v1899 = vxor.u32 %v1895, 2147483648
    %v1900 = vmul.f32 %v1898, 1.442695
    %v1901 = vpow.pop %v1900
    %v1902 = vmul.f32 %v1899, 1.442695
    %v1903 = vpow.pop %v1902
    %v1904 = vadd.f32 %v1901, 1.0
    %v1905 = vadd.f32 %v1903, 1.0
    %v1906 = vrcp.pop %v1904
    %v1907 = vmul.f32 1.0, %v1906
    %v1908 = vrcp.pop %v1905
    %v1909 = vmul.f32 1.0, %v1908
    %1910 = vst.msk [vmem:[#allocation4] sm:$0xff] %vm30, %v1907
    %1911 = vst.msk [vmem:[#allocation4 + $0x8] sm:$0xff] %vm30, %v1909
    // Predicated region
    $region22: #{igae_decoder_forward.1} parent=1 // pred_check
      _
    $region23: #{igae_decoder_forward.1} parent=1 // pred_check_branch
      %1913 = sbr.rel (0) target = $region25
    $region24: #{igae_decoder_forward.1} parent=1 // pred_region
      %s1915 = ssub.s32 256, 256
      %1916 = vsyncadd [#allocation3], %s1915
      %s1917 = sshll.u32 [#allocation2], 4
      %s1918 = int_to_ptr.vmem [resolvable:$true] %s1917
      %1923 = dma.vmem_to_hbm [thread:$0]  %s1918, 256, %s5, [#allocation3], 128, 128, 8
    $region25: #{igae_decoder_forward.1} parent=1 // pred_fallthru
      _
    // Predicated region
    $region26: #{igae_decoder_forward.1} parent=1 // pred_check
      _
    $region27: #{igae_decoder_forward.1} parent=1 // pred_check_branch
      %1925 = sbr.rel (0) target = $region29
    $region28: #{igae_decoder_forward.1} parent=1 // pred_region
      %s1927 = ssub.s32 256, 256
      %1928 = vsyncadd [#allocation5], %s1927
      %s1929 = sshll.u32 [#allocation4], 4
      %s1930 = int_to_ptr.vmem [resolvable:$true] %s1929
      %1935 = dma.vmem_to_hbm [thread:$0]  %s1930, 256, %s6, [#allocation5], 128, 128, 8
    $region29: #{igae_decoder_forward.1} parent=1 // pred_fallthru
      _
    // Predicated region
    $region30: #{igae_decoder_forward.1} parent=1 // pred_check
      _
    $region31: #{igae_decoder_forward.1} parent=1 // pred_check_branch
      %1937 = sbr.rel (0) target = $region33
    $region32: #{igae_decoder_forward.1} parent=1 // pred_region
      %1938 = dma.done [#allocation3], 256
    $region33: #{igae_decoder_forward.1} parent=1 // pred_fallthru
      _
    // Predicated region
    $region34: #{igae_decoder_forward.1} parent=1 // pred_check
      _
    $region35: #{igae_decoder_forward.1} parent=1 // pred_check_branch
      %1940 = sbr.rel (0) target = $region37
    $region36: #{igae_decoder_forward.1} parent=1 // pred_region
      %1941 = dma.done [#allocation5], 256
    $region37: #{igae_decoder_forward.1} parent=1 // pred_fallthru
      _
    %1942 = vsyncpa [#allocation3], 1
    %1943 = vsyncpa [#allocation5], 1

</llo_original>
